<compile_context>
chip_gen: v6e
topology: v6e:2x2x1
jax: 0.10.0
libtpu: 0.0.40
codegen_flags: <defaults>
</compile_context>

<pallas_src>
import jax
import jax.numpy as jnp
from jax.experimental import pallas as pl
from jax.experimental.pallas import tpu as pltpu

INPUT_DIM = 1024        # module default input_dim
HIDDEN = 256            # module's fixed hidden = [256, 256, 256]
NUM_CLASS = 2           # module default num_class
N_INSTANCES = 16        # small synthetic bag size
N_BAGS = 8              # bags batched into the matmul M dimension
BAG_TILE = 8            # bags per grid step


def avgpool_mlp_kernel(x_ref, w1_ref, b1_ref, w2_ref, b2_ref, w3_ref, b3_ref,
                       wc_ref, bc_ref, out_ref):
    # x tile: (BM, N, D) f32. Mean over instances == rearrange + AvgPool1d(N).
    x = x_ref[...].astype(jnp.float32)
    pooled = jnp.mean(x, axis=1)                              # (BM, D), f32

    # emb: 3 x [Linear + ReLU] (Dropout is identity in eval mode).
    # bf16 MXU operands, f32 accumulation, f32 bias-add / ReLU.
    h = jnp.dot(pooled.astype(jnp.bfloat16), w1_ref[...],
                preferred_element_type=jnp.float32) + b1_ref[...]
    h = jnp.maximum(h, 0.0)
    h = jnp.dot(h.astype(jnp.bfloat16), w2_ref[...],
                preferred_element_type=jnp.float32) + b2_ref[...]
    h = jnp.maximum(h, 0.0)
    h = jnp.dot(h.astype(jnp.bfloat16), w3_ref[...],
                preferred_element_type=jnp.float32) + b3_ref[...]
    h = jnp.maximum(h, 0.0)

    # classifier + hazards + survival curve.
    logits = jnp.dot(h.astype(jnp.bfloat16), wc_ref[...],
                     preferred_element_type=jnp.float32) + bc_ref[...]   # (BM, C)
    hazards = jax.nn.sigmoid(logits)

    # S = cumprod(1 - hazards, dim=1), built as a full (BM, C) value (single
    # vector assembly, single store) instead of per-column masked stores.
    one_minus = 1.0 - hazards
    cols = []
    prod = jnp.ones((logits.shape[0], 1), jnp.float32)
    for c in range(NUM_CLASS):
        prod = prod * one_minus[:, c:c + 1]
        cols.append(prod)
    s = jnp.concatenate(cols, axis=1)

    # One fused output write: [logits | hazards | S] -> (BM, 3*C).
    out_ref[...] = jnp.concatenate([logits, hazards, s], axis=1).astype(out_ref.dtype)


def avgpool_mlp_batched(wsi, params, bag_tile=BAG_TILE):
    """wsi: (B, N, D) — B independent bags, each processed exactly as the module's forward."""
    (w1, b1), (w2, b2), (w3, b3), (wc, bc) = params
    B, N, D = wsi.shape
    assert B % bag_tile == 0, "demo keeps B divisible by the bag tile"
    num_class = wc.shape[1]

    def const_spec(shape):
        # Full-array block with a constant index_map -> stays VMEM-resident
        # across the (parallel) bag grid; weights are DMA'd once.
        return pl.BlockSpec(shape, lambda i: (0,) * len(shape))

    out = pl.pallas_call(
        avgpool_mlp_kernel,
        out_shape=jax.ShapeDtypeStruct((B, 3 * num_class), jnp.float32),
        grid=(B // bag_tile,),
        in_specs=[
            pl.BlockSpec((bag_tile, N, D), lambda i: (i, 0, 0)),   # x: tiled per bag group
            const_spec(w1.shape), const_spec(b1.shape),
            const_spec(w2.shape), const_spec(b2.shape),
            const_spec(w3.shape), const_spec(b3.shape),
            const_spec(wc.shape), const_spec(bc.shape),
        ],
        out_specs=pl.BlockSpec((bag_tile, 3 * num_class), lambda i: (i, 0)),
        compiler_params=pltpu.CompilerParams(
            dimension_semantics=("parallel",),
        ),
    )(wsi, w1, b1, w2, b2, w3, b3, wc, bc)

    logits, hazards, S = jnp.split(out, 3, axis=1)
    return logits, hazards, S


def avgpool_mlp(wsi, params):
    """Single-bag entry point matching the PyTorch module: wsi (N, D) -> (1, C) x3."""
    logits, hazards, S = avgpool_mlp_batched(wsi[None], params, bag_tile=1)
    return logits, hazards, S


def init_params(key):
    """Deterministic PyTorch-Linear-style init (uniform +/- 1/sqrt(fan_in)); weights bf16."""
    dims = [(INPUT_DIM, HIDDEN), (HIDDEN, HIDDEN), (HIDDEN, HIDDEN), (HIDDEN, NUM_CLASS)]
    params = []
    for din, dout in dims:
        key, kw, kb = jax.random.split(key, 3)
        bound = 1.0 / float(din) ** 0.5
        w = jax.random.uniform(kw, (din, dout), jnp.float32, -bound, bound)
        b = jax.random.uniform(kb, (1, dout), jnp.float32, -bound, bound)
        params.append((w.astype(jnp.bfloat16), b))   # bf16 weights, f32 biases
    return params


def _reference(wsi, params):
    """Pure-JAX reference (same bf16 weights, f32 math) for a loose numerics check."""
    (w1, b1), (w2, b2), (w3, b3), (wc, bc) = params
    pooled = jnp.mean(wsi.astype(jnp.float32), axis=1)
    h = jnp.maximum(pooled @ w1.astype(jnp.float32) + b1, 0.0)
    h = jnp.maximum(h @ w2.astype(jnp.float32) + b2, 0.0)
    h = jnp.maximum(h @ w3.astype(jnp.float32) + b3, 0.0)
    logits = h @ wc.astype(jnp.float32) + bc
    hazards = jax.nn.sigmoid(logits)
    S = jnp.cumprod(1.0 - hazards, axis=1)
    return logits, hazards, S


if __name__ == "__main__":
    key = jax.random.PRNGKey(0)
    kx, kp = jax.random.split(key)
    wsi = jax.random.normal(kx, (N_BAGS, N_INSTANCES, INPUT_DIM), jnp.float32)
    params = init_params(kp)

    logits, hazards, S = jax.jit(avgpool_mlp_batched)(wsi, params)
    jax.block_until_ready((logits, hazards, S))

    assert logits.shape == (N_BAGS, NUM_CLASS)
    assert hazards.shape == (N_BAGS, NUM_CLASS)
    assert S.shape == (N_BAGS, NUM_CLASS)

    # Internal consistency: hazards = sigmoid(logits), S = cumprod(1 - hazards).
    assert jnp.allclose(hazards, jax.nn.sigmoid(logits), atol=1e-5)
    assert jnp.allclose(S, jnp.cumprod(1.0 - hazards, axis=1), atol=1e-5)

    # Loose check vs. a pure-JAX reference (bf16 activation casts inside the kernel).
    ref_logits, ref_hazards, ref_S = _reference(wsi, params)
    assert jnp.allclose(logits, ref_logits, rtol=5e-2, atol=5e-2)
    assert jnp.allclose(hazards, ref_hazards, rtol=5e-2, atol=5e-2)
    assert jnp.allclose(S, ref_S, rtol=5e-2, atol=5e-2)

    # Single-bag path identical to the PyTorch module's forward signature.
    l1, h1, s1 = jax.jit(avgpool_mlp)(wsi[0], params)
    jax.block_until_ready((l1, h1, s1))
    assert l1.shape == (1, NUM_CLASS) and h1.shape == (1, NUM_CLASS) and s1.shape == (1, NUM_CLASS)

    print("KERNEL_OK")
</pallas_src>

<mosaic_0001>
module attributes {stable_mosaic.version = 11 : i64} {
  func.func @avgpool_mlp_kernel(%arg0: i32, %arg1: memref<8x16x1024xf32, #tpu.memory_space<vmem>>, %arg2: memref<1024x256xbf16, #tpu.memory_space<vmem>>, %arg3: memref<1x256xf32, #tpu.memory_space<vmem>>, %arg4: memref<256x256xbf16, #tpu.memory_space<vmem>>, %arg5: memref<1x256xf32, #tpu.memory_space<vmem>>, %arg6: memref<256x256xbf16, #tpu.memory_space<vmem>>, %arg7: memref<1x256xf32, #tpu.memory_space<vmem>>, %arg8: memref<256x2xbf16, #tpu.memory_space<vmem>>, %arg9: memref<1x2xf32, #tpu.memory_space<vmem>>, %arg10: memref<8x6xf32, #tpu.memory_space<vmem>>) attributes {dimension_semantics = [#tpu.dimension_semantics<parallel>], iteration_bounds = array<i64: 1>, scalar_prefetch = 0 : i64, scratch_operands = 0 : i64, tpu.core_type = #tpu.core_type<tc>, window_params = [{transform_indices = @transform_0, window_bounds = array<i64: 8, 16, 1024>}, {pipeline_mode = #tpu.pipeline_mode<synchronous>, transform_indices = @transform_1, window_bounds = array<i64: 1024, 256>}, {pipeline_mode = #tpu.pipeline_mode<synchronous>, transform_indices = @transform_2, window_bounds = array<i64: 1, 256>}, {pipeline_mode = #tpu.pipeline_mode<synchronous>, transform_indices = @transform_3, window_bounds = array<i64: 256, 256>}, {pipeline_mode = #tpu.pipeline_mode<synchronous>, transform_indices = @transform_4, window_bounds = array<i64: 1, 256>}, {pipeline_mode = #tpu.pipeline_mode<synchronous>, transform_indices = @transform_5, window_bounds = array<i64: 256, 256>}, {pipeline_mode = #tpu.pipeline_mode<synchronous>, transform_indices = @transform_6, window_bounds = array<i64: 1, 256>}, {pipeline_mode = #tpu.pipeline_mode<synchronous>, transform_indices = @transform_7, window_bounds = array<i64: 256, 2>}, {pipeline_mode = #tpu.pipeline_mode<synchronous>, transform_indices = @transform_8, window_bounds = array<i64: 1, 2>}, {transform_indices = @transform_9, window_bounds = array<i64: 8, 6>}]} {
    %c0 = arith.constant 0 : index
    %c0_0 = arith.constant 0 : index
    %c0_1 = arith.constant 0 : index
    %0 = vector.load %arg1[%c0, %c0_0, %c0_1] : memref<8x16x1024xf32, #tpu.memory_space<vmem>>, vector<8x16x1024xf32>
    %cst = arith.constant dense<0.000000e+00> : vector<8x1024xf32>
    %1 = vector.multi_reduction <add>, %0, %cst [1] : vector<8x16x1024xf32> to vector<8x1024xf32>
    %cst_2 = arith.constant 1.600000e+01 : f32
    %2 = vector.broadcast %cst_2 : f32 to vector<8x1024xf32>
    %3 = arith.divf %1, %2 : vector<8x1024xf32>
    %4 = arith.truncf %3 : vector<8x1024xf32> to vector<8x1024xbf16>
    %c0_3 = arith.constant 0 : index
    %c0_4 = arith.constant 0 : index
    %5 = vector.load %arg2[%c0_3, %c0_4] : memref<1024x256xbf16, #tpu.memory_space<vmem>>, vector<1024x256xbf16>
    %cst_5 = arith.constant dense<0.000000e+00> : vector<8x256xf32>
    %6 = tpu.matmul %4, %5, %cst_5 {dimension_numbers = #tpu.dot_dimension_numbers<[1], [0], [0], [1], [0, 0, 1, 1], [], []>} : vector<8x1024xbf16>, vector<1024x256xbf16>, vector<8x256xf32> -> vector<8x256xf32>
    %c0_6 = arith.constant 0 : index
    %c0_7 = arith.constant 0 : index
    %7 = vector.load %arg3[%c0_6, %c0_7] : memref<1x256xf32, #tpu.memory_space<vmem>>, vector<1x256xf32>
    %8 = vector.broadcast %7 : vector<1x256xf32> to vector<8x256xf32>
    %9 = arith.addf %6, %8 : vector<8x256xf32>
    %cst_8 = arith.constant 0.000000e+00 : f32
    %10 = vector.broadcast %cst_8 : f32 to vector<8x256xf32>
    %11 = arith.maximumf %9, %10 : vector<8x256xf32>
    %12 = arith.truncf %11 : vector<8x256xf32> to vector<8x256xbf16>
    %c0_9 = arith.constant 0 : index
    %c0_10 = arith.constant 0 : index
    %13 = vector.load %arg4[%c0_9, %c0_10] : memref<256x256xbf16, #tpu.memory_space<vmem>>, vector<256x256xbf16>
    %cst_11 = arith.constant dense<0.000000e+00> : vector<8x256xf32>
    %14 = tpu.matmul %12, %13, %cst_11 {dimension_numbers = #tpu.dot_dimension_numbers<[1], [0], [0], [1], [0, 0, 1, 1], [], []>} : vector<8x256xbf16>, vector<256x256xbf16>, vector<8x256xf32> -> vector<8x256xf32>
    %c0_12 = arith.constant 0 : index
    %c0_13 = arith.constant 0 : index
    %15 = vector.load %arg5[%c0_12, %c0_13] : memref<1x256xf32, #tpu.memory_space<vmem>>, vector<1x256xf32>
    %16 = vector.broadcast %15 : vector<1x256xf32> to vector<8x256xf32>
    %17 = arith.addf %14, %16 : vector<8x256xf32>
    %cst_14 = arith.constant 0.000000e+00 : f32
    %18 = vector.broadcast %cst_14 : f32 to vector<8x256xf32>
    %19 = arith.maximumf %17, %18 : vector<8x256xf32>
    %20 = arith.truncf %19 : vector<8x256xf32> to vector<8x256xbf16>
    %c0_15 = arith.constant 0 : index
    %c0_16 = arith.constant 0 : index
    %21 = vector.load %arg6[%c0_15, %c0_16] : memref<256x256xbf16, #tpu.memory_space<vmem>>, vector<256x256xbf16>
    %cst_17 = arith.constant dense<0.000000e+00> : vector<8x256xf32>
    %22 = tpu.matmul %20, %21, %cst_17 {dimension_numbers = #tpu.dot_dimension_numbers<[1], [0], [0], [1], [0, 0, 1, 1], [], []>} : vector<8x256xbf16>, vector<256x256xbf16>, vector<8x256xf32> -> vector<8x256xf32>
    %c0_18 = arith.constant 0 : index
    %c0_19 = arith.constant 0 : index
    %23 = vector.load %arg7[%c0_18, %c0_19] : memref<1x256xf32, #tpu.memory_space<vmem>>, vector<1x256xf32>
    %24 = vector.broadcast %23 : vector<1x256xf32> to vector<8x256xf32>
    %25 = arith.addf %22, %24 : vector<8x256xf32>
    %cst_20 = arith.constant 0.000000e+00 : f32
    %26 = vector.broadcast %cst_20 : f32 to vector<8x256xf32>
    %27 = arith.maximumf %25, %26 : vector<8x256xf32>
    %28 = arith.truncf %27 : vector<8x256xf32> to vector<8x256xbf16>
    %c0_21 = arith.constant 0 : index
    %c0_22 = arith.constant 0 : index
    %29 = vector.load %arg8[%c0_21, %c0_22] : memref<256x2xbf16, #tpu.memory_space<vmem>>, vector<256x2xbf16>
    %cst_23 = arith.constant dense<0.000000e+00> : vector<8x2xf32>
    %30 = tpu.matmul %28, %29, %cst_23 {dimension_numbers = #tpu.dot_dimension_numbers<[1], [0], [0], [1], [0, 0, 1, 1], [], []>} : vector<8x256xbf16>, vector<256x2xbf16>, vector<8x2xf32> -> vector<8x2xf32>
    %c0_24 = arith.constant 0 : index
    %c0_25 = arith.constant 0 : index
    %31 = vector.load %arg9[%c0_24, %c0_25] : memref<1x2xf32, #tpu.memory_space<vmem>>, vector<1x2xf32>
    %32 = vector.broadcast %31 : vector<1x2xf32> to vector<8x2xf32>
    %33 = arith.addf %30, %32 : vector<8x2xf32>
    %34 = arith.negf %33 : vector<8x2xf32>
    %35 = math.exp %34 : vector<8x2xf32>
    %cst_26 = arith.constant 1.000000e+00 : f32
    %36 = vector.broadcast %cst_26 : f32 to vector<8x2xf32>
    %37 = arith.addf %36, %35 : vector<8x2xf32>
    %38 = arith.divf %36, %37 : vector<8x2xf32>
    %cst_27 = arith.constant 1.000000e+00 : f32
    %39 = vector.broadcast %cst_27 : f32 to vector<8x2xf32>
    %40 = arith.subf %39, %38 : vector<8x2xf32>
    %cst_28 = arith.constant 1.000000e+00 : f32
    %41 = vector.broadcast %cst_28 : f32 to vector<8x1xf32>
    %42 = vector.extract_strided_slice %40 {offsets = [0, 0], sizes = [8, 1], strides = [1, 1]} : vector<8x2xf32> to vector<8x1xf32>
    %43 = arith.mulf %41, %42 : vector<8x1xf32>
    %44 = vector.extract_strided_slice %40 {offsets = [0, 1], sizes = [8, 1], strides = [1, 1]} : vector<8x2xf32> to vector<8x1xf32>
    %45 = arith.mulf %43, %44 : vector<8x1xf32>
    %46 = tpu.concatenate %43, %45 in 1 : vector<8x1xf32>, vector<8x1xf32> -> vector<8x2xf32>
    %47 = tpu.concatenate %33, %38, %46 in 1 : vector<8x2xf32>, vector<8x2xf32>, vector<8x2xf32> -> vector<8x6xf32>
    %c0_29 = arith.constant 0 : index
    %c0_30 = arith.constant 0 : index
    %48 = vector.load %arg10[%c0_29, %c0_30] : memref<8x6xf32, #tpu.memory_space<vmem>>, vector<8x6xf32>
    tpu.vector_store %arg10[%c0_29, %c0_30], %47 {strides = array<i32>} : memref<8x6xf32, #tpu.memory_space<vmem>>, vector<8x6xf32>,
    return
  }
  func.func @transform_0(%arg0: i32) -> (i32, i32, i32) {
    %c0_i32 = arith.constant 0 : i32
    %c0_i32_0 = arith.constant 0 : i32
    %c0_i32_1 = arith.constant 0 : i32
    return %arg0, %c0_i32, %c0_i32_0 : i32, i32, i32
  }
  func.func @transform_1(%arg0: i32) -> (i32, i32) {
    %c0_i32 = arith.constant 0 : i32
    %c0_i32_0 = arith.constant 0 : i32
    %c0_i32_1 = arith.constant 0 : i32
    return %c0_i32, %c0_i32_0 : i32, i32
  }
  func.func @transform_2(%arg0: i32) -> (i32, i32) {
    %c0_i32 = arith.constant 0 : i32
    %c0_i32_0 = arith.constant 0 : i32
    %c0_i32_1 = arith.constant 0 : i32
    return %c0_i32, %c0_i32_0 : i32, i32
  }
  func.func @transform_3(%arg0: i32) -> (i32, i32) {
    %c0_i32 = arith.constant 0 : i32
    %c0_i32_0 = arith.constant 0 : i32
    %c0_i32_1 = arith.constant 0 : i32
    return %c0_i32, %c0_i32_0 : i32, i32
  }
  func.func @transform_4(%arg0: i32) -> (i32, i32) {
    %c0_i32 = arith.constant 0 : i32
    %c0_i32_0 = arith.constant 0 : i32
    %c0_i32_1 = arith.constant 0 : i32
    return %c0_i32, %c0_i32_0 : i32, i32
  }
  func.func @transform_5(%arg0: i32) -> (i32, i32) {
    %c0_i32 = arith.constant 0 : i32
    %c0_i32_0 = arith.constant 0 : i32
    %c0_i32_1 = arith.constant 0 : i32
    return %c0_i32, %c0_i32_0 : i32, i32
  }
  func.func @transform_6(%arg0: i32) -> (i32, i32) {
    %c0_i32 = arith.constant 0 : i32
    %c0_i32_0 = arith.constant 0 : i32
    %c0_i32_1 = arith.constant 0 : i32
    return %c0_i32, %c0_i32_0 : i32, i32
  }
  func.func @transform_7(%arg0: i32) -> (i32, i32) {
    %c0_i32 = arith.constant 0 : i32
    %c0_i32_0 = arith.constant 0 : i32
    %c0_i32_1 = arith.constant 0 : i32
    return %c0_i32, %c0_i32_0 : i32, i32
  }
  func.func @transform_8(%arg0: i32) -> (i32, i32) {
    %c0_i32 = arith.constant 0 : i32
    %c0_i32_0 = arith.constant 0 : i32
    %c0_i32_1 = arith.constant 0 : i32
    return %c0_i32, %c0_i32_0 : i32, i32
  }
  func.func @transform_9(%arg0: i32) -> (i32, i32) {
    %c0_i32 = arith.constant 0 : i32
    %c0_i32_0 = arith.constant 0 : i32
    return %arg0, %c0_i32 : i32, i32
  }
}

</mosaic_0001>

<llo_original>
// kernel: avgpool_mlp_batched.1
$region0: #{avgpool_mlp_batched.1}
  #allocation0 [shape = 'u32[]', space=smem, size = 0x4, offset = 0x4, fixed_abs, tag = 'smem constant byte address 0x4 - core index']
  #allocation1 [shape = 'u32[144,128]{1,0:T(1,128)}', space=vmem, size = 0x12000, scoped, tag = 'internal scratch']
  %s0 = inlined_call_operand.hbm [shape: f32[8,16,1024], index: 0, kind: input, shape index: {}]
  %s1 = inlined_call_operand.hbm [shape: bf16[1024,256], index: 1, kind: input, shape index: {}]
  %s2 = inlined_call_operand.vmem [shape: f32[1,256], index: 2, kind: input, shape index: {}]
  %s3 = inlined_call_operand.hbm [shape: bf16[256,256], index: 3, kind: input, shape index: {}]
  %s4 = inlined_call_operand.vmem [shape: f32[1,256], index: 4, kind: input, shape index: {}]
  %s5 = inlined_call_operand.hbm [shape: bf16[256,256], index: 5, kind: input, shape index: {}]
  %s6 = inlined_call_operand.vmem [shape: f32[1,256], index: 6, kind: input, shape index: {}]
  %s7 = inlined_call_operand.vmem [shape: bf16[256,2], index: 7, kind: input, shape index: {}]
  %s8 = inlined_call_operand.vmem [shape: f32[1,2], index: 8, kind: input, shape index: {}]
  %s9 = inlined_call_operand.vmem [shape: f32[8,6], index: 9, kind: output, shape index: {}]
  %s10 = sld [smem:[#allocation0]]
  $region62: #{avgpool_mlp_batched.1} parent=0
    _
  %s12 = ssub.s32 1, %s10
  %s13 = scalar_select 0, %s12, %s10
  $region1: #{avgpool_mlp_batched.1} parent=0
    #allocation2 [shape = 'u8[524288]{0}', space=vmem, size = 0x80000, scoped, tag = 'input window, operand 0, single buffered']
    #allocation3 [shape = 's32[1]{0}', space=sflag, size = 0x4, scoped, tag = 'scoped memory for avgpool_mlp_batched.1']
    #allocation4 [shape = 'u8[524288]{0}', space=vmem, size = 0x80000, scoped, tag = 'input window, operand 1, single buffered']
    #allocation5 [shape = 's32[1]{0}', space=sflag, size = 0x4, scoped, tag = 'scoped memory for avgpool_mlp_batched.1']
    #allocation6 [shape = 'u8[131072]{0}', space=vmem, size = 0x20000, scoped, tag = 'input window, operand 3, single buffered']
    #allocation7 [shape = 'u8[131072]{0}', space=vmem, size = 0x20000, scoped, tag = 'input window, operand 5, single buffered']
    #allocation8 [shape = 's32[1]{0}', space=sflag, size = 0x4, scoped, tag = 'scoped memory for avgpool_mlp_batched.1']
    %14 = vsyncpa [#allocation3], 0
    %15 = vsyncpa [#allocation5], 0
    %16 = vsyncpa [#allocation8], 0
    // Predicated region
    $region2: #{avgpool_mlp_batched.1} parent=1 // pred_check
      _
    $region3: #{avgpool_mlp_batched.1} parent=1 // pred_check_branch
      %18 = sbr.rel (0) target = $region5
    $region4: #{avgpool_mlp_batched.1} parent=1 // pred_region
      %s20 = ssub.s32 16384, 16384
      %21 = vsyncadd [#allocation3], %s20
      %s22 = sshll.u32 [#allocation2], 4
      %s23 = int_to_ptr.vmem [resolvable:$true] %s22
      %28 = dma.hbm_to_vmem [thread:$0]  %s0, 16384, %s23, [#allocation3], 1024, 1024, 64
    $region5: #{avgpool_mlp_batched.1} parent=1 // pred_fallthru
      _
    // Predicated region
    $region6: #{avgpool_mlp_batched.1} parent=1 // pred_check
      _
    $region7: #{avgpool_mlp_batched.1} parent=1 // pred_check_branch
      %30 = sbr.rel (0) target = $region9
    $region8: #{avgpool_mlp_batched.1} parent=1 // pred_region
      %s32 = ssub.s32 16384, 16384
      %33 = vsyncadd [#allocation5], %s32
      %s34 = sshll.u32 [#allocation4], 4
      %s35 = int_to_ptr.vmem [resolvable:$true] %s34
      %40 = dma.hbm_to_vmem [thread:$0]  %s1, 16384, %s35, [#allocation5], 128, 128, 8
    $region9: #{avgpool_mlp_batched.1} parent=1 // pred_fallthru
      _
    // Predicated region
    $region10: #{avgpool_mlp_batched.1} parent=1 // pred_check
      _
    $region11: #{avgpool_mlp_batched.1} parent=1 // pred_check_branch
      %42 = sbr.rel (0) target = $region13
    $region12: #{avgpool_mlp_batched.1} parent=1 // pred_region
      _
    $region13: #{avgpool_mlp_batched.1} parent=1 // pred_fallthru
      _
    // Predicated region
    $region14: #{avgpool_mlp_batched.1} parent=1 // pred_check
      _
    $region15: #{avgpool_mlp_batched.1} parent=1 // pred_check_branch
      %44 = sbr.rel (0) target = $region17
    $region16: #{avgpool_mlp_batched.1} parent=1 // pred_region
      %s46 = ssub.s32 4096, 4096
      %47 = vsyncadd [#allocation5], %s46
      %s48 = sshll.u32 [#allocation6], 4
      %s49 = int_to_ptr.vmem [resolvable:$true] %s48
      %54 = dma.hbm_to_vmem [thread:$0]  %s3, 4096, %s49, [#allocation5], 128, 128, 8
    $region17: #{avgpool_mlp_batched.1} parent=1 // pred_fallthru
      _
    // Predicated region
    $region18: #{avgpool_mlp_batched.1} parent=1 // pred_check
      _
    $region19: #{avgpool_mlp_batched.1} parent=1 // pred_check_branch
      %56 = sbr.rel (0) target = $region21
    $region20: #{avgpool_mlp_batched.1} parent=1 // pred_region
      _
    $region21: #{avgpool_mlp_batched.1} parent=1 // pred_fallthru
      _
    // Predicated region
    $region22: #{avgpool_mlp_batched.1} parent=1 // pred_check
      _
    $region23: #{avgpool_mlp_batched.1} parent=1 // pred_check_branch
      %58 = sbr.rel (0) target = $region25
    $region24: #{avgpool_mlp_batched.1} parent=1 // pred_region
      %s60 = ssub.s32 4096, 4096
      %61 = vsyncadd [#allocation8], %s60
      %s62 = sshll.u32 [#allocation7], 4
      %s63 = int_to_ptr.vmem [resolvable:$true] %s62
      %68 = dma.hbm_to_vmem [thread:$0]  %s5, 4096, %s63, [#allocation8], 128, 128, 8
    $region25: #{avgpool_mlp_batched.1} parent=1 // pred_fallthru
      _
    // Predicated region
    $region26: #{avgpool_mlp_batched.1} parent=1 // pred_check
      _
    $region27: #{avgpool_mlp_batched.1} parent=1 // pred_check_branch
      %70 = sbr.rel (0) target = $region29
    $region28: #{avgpool_mlp_batched.1} parent=1 // pred_region
      _
    $region29: #{avgpool_mlp_batched.1} parent=1 // pred_fallthru
      _
    // Predicated region
    $region30: #{avgpool_mlp_batched.1} parent=1 // pred_check
      _
    $region31: #{avgpool_mlp_batched.1} parent=1 // pred_check_branch
      %72 = sbr.rel (0) target = $region33
    $region32: #{avgpool_mlp_batched.1} parent=1 // pred_region
      _
    $region33: #{avgpool_mlp_batched.1} parent=1 // pred_fallthru
      _
    // Predicated region
    $region34: #{avgpool_mlp_batched.1} parent=1 // pred_check
      _
    $region35: #{avgpool_mlp_batched.1} parent=1 // pred_check_branch
      %74 = sbr.rel (0) target = $region37
    $region36: #{avgpool_mlp_batched.1} parent=1 // pred_region
      _
    $region37: #{avgpool_mlp_batched.1} parent=1 // pred_fallthru
      _
    // Predicated region
    $region38: #{avgpool_mlp_batched.1} parent=1 // pred_check
      _
    $region39: #{avgpool_mlp_batched.1} parent=1 // pred_check_branch
      %76 = sbr.rel (0) target = $region41
    $region40: #{avgpool_mlp_batched.1} parent=1 // pred_region
      %77 = dma.done [#allocation3], 16384
    $region41: #{avgpool_mlp_batched.1} parent=1 // pred_fallthru
      _
    // Predicated region
    $region42: #{avgpool_mlp_batched.1} parent=1 // pred_check
      _
    $region43: #{avgpool_mlp_batched.1} parent=1 // pred_check_branch
      %79 = sbr.rel (0) target = $region45
    $region44: #{avgpool_mlp_batched.1} parent=1 // pred_region
      %80 = dma.done [#allocation5], 16384
    $region45: #{avgpool_mlp_batched.1} parent=1 // pred_fallthru
      _
    // Predicated region
    $region46: #{avgpool_mlp_batched.1} parent=1 // pred_check
      _
    $region47: #{avgpool_mlp_batched.1} parent=1 // pred_check_branch
      %82 = sbr.rel (0) target = $region49
    $region48: #{avgpool_mlp_batched.1} parent=1 // pred_region
      %83 = dma.done [#allocation5], 4096
    $region49: #{avgpool_mlp_batched.1} parent=1 // pred_fallthru
      _
    // Predicated region
    $region50: #{avgpool_mlp_batched.1} parent=1 // pred_check
      _
    $region51: #{avgpool_mlp_batched.1} parent=1 // pred_check_branch
      %85 = sbr.rel (0) target = $region53
    $region52: #{avgpool_mlp_batched.1} parent=1 // pred_region
      %86 = dma.done [#allocation8], 4096
    $region53: #{avgpool_mlp_batched.1} parent=1 // pred_fallthru
      _
    %v88 = vld [vmem:[#allocation2] sm:$0xff]
    %v89 = vld [vmem:[#allocation2 + $0x8] sm:$0xff]
    %v90 = vld [vmem:[#allocation2 + $0x10] sm:$0xff]
    %v91 = vld [vmem:[#allocation2 + $0x18] sm:$0xff]
    %v92 = vld [vmem:[#allocation2 + $0x20] sm:$0xff]
    %v93 = vld [vmem:[#allocation2 + $0x28] sm:$0xff]
    %v94 = vld [vmem:[#allocation2 + $0x30] sm:$0xff]
    %v95 = vld [vmem:[#allocation2 + $0x38] sm:$0xff]
    %v96 = vld [vmem:[#allocation2 + $0x40] sm:$0xff]
    %v97 = vld [vmem:[#allocation2 + $0x48] sm:$0xff]
    %v98 = vld [vmem:[#allocation2 + $0x50] sm:$0xff]
    %v99 = vld [vmem:[#allocation2 + $0x58] sm:$0xff]
    %v100 = vld [vmem:[#allocation2 + $0x60] sm:$0xff]
    %v101 = vld [vmem:[#allocation2 + $0x68] sm:$0xff]
    %v102 = vld [vmem:[#allocation2 + $0x70] sm:$0xff]
    %v103 = vld [vmem:[#allocation2 + $0x78] sm:$0xff]
    %v104 = vld [vmem:[#allocation2 + $0x80] sm:$0xff]
    %v105 = vld [vmem:[#allocation2 + $0x88] sm:$0xff]
    %v106 = vld [vmem:[#allocation2 + $0x90] sm:$0xff]
    %v107 = vld [vmem:[#allocation2 + $0x98] sm:$0xff]
    %v108 = vld [vmem:[#allocation2 + $0xa0] sm:$0xff]
    %v109 = vld [vmem:[#allocation2 + $0xa8] sm:$0xff]
    %v110 = vld [vmem:[#allocation2 + $0xb0] sm:$0xff]
    %v111 = vld [vmem:[#allocation2 + $0xb8] sm:$0xff]
    %v112 = vld [vmem:[#allocation2 + $0xc0] sm:$0xff]
    %v113 = vld [vmem:[#allocation2 + $0xc8] sm:$0xff]
    %v114 = vld [vmem:[#allocation2 + $0xd0] sm:$0xff]
    %v115 = vld [vmem:[#allocation2 + $0xd8] sm:$0xff]
    %v116 = vld [vmem:[#allocation2 + $0xe0] sm:$0xff]
    %v117 = vld [vmem:[#allocation2 + $0xe8] sm:$0xff]
    %v118 = vld [vmem:[#allocation2 + $0xf0] sm:$0xff]
    %v119 = vld [vmem:[#allocation2 + $0xf8] sm:$0xff]
    %v120 = vld [vmem:[#allocation2 + $0x100] sm:$0xff]
    %v121 = vld [vmem:[#allocation2 + $0x108] sm:$0xff]
    %v122 = vld [vmem:[#allocation2 + $0x110] sm:$0xff]
    %v123 = vld [vmem:[#allocation2 + $0x118] sm:$0xff]
    %v124 = vld [vmem:[#allocation2 + $0x120] sm:$0xff]
    %v125 = vld [vmem:[#allocation2 + $0x128] sm:$0xff]
    %v126 = vld [vmem:[#allocation2 + $0x130] sm:$0xff]
    %v127 = vld [vmem:[#allocation2 + $0x138] sm:$0xff]
    %v128 = vld [vmem:[#allocation2 + $0x140] sm:$0xff]
    %v129 = vld [vmem:[#allocation2 + $0x148] sm:$0xff]
    %v130 = vld [vmem:[#allocation2 + $0x150] sm:$0xff]
    %v131 = vld [vmem:[#allocation2 + $0x158] sm:$0xff]
    %v132 = vld [vmem:[#allocation2 + $0x160] sm:$0xff]
    %v133 = vld [vmem:[#allocation2 + $0x168] sm:$0xff]
    %v134 = vld [vmem:[#allocation2 + $0x170] sm:$0xff]
    %v135 = vld [vmem:[#allocation2 + $0x178] sm:$0xff]
    %v136 = vld [vmem:[#allocation2 + $0x180] sm:$0xff]
    %v137 = vld [vmem:[#allocation2 + $0x188] sm:$0xff]
    %v138 = vld [vmem:[#allocation2 + $0x190] sm:$0xff]
    %v139 = vld [vmem:[#allocation2 + $0x198] sm:$0xff]
    %v140 = vld [vmem:[#allocation2 + $0x1a0] sm:$0xff]
    %v141 = vld [vmem:[#allocation2 + $0x1a8] sm:$0xff]
    %v142 = vld [vmem:[#allocation2 + $0x1b0] sm:$0xff]
    %v143 = vld [vmem:[#allocation2 + $0x1b8] sm:$0xff]
    %v144 = vld [vmem:[#allocation2 + $0x1c0] sm:$0xff]
    %v145 = vld [vmem:[#allocation2 + $0x1c8] sm:$0xff]
    %v146 = vld [vmem:[#allocation2 + $0x1d0] sm:$0xff]
    %v147 = vld [vmem:[#allocation2 + $0x1d8] sm:$0xff]
    %v148 = vld [vmem:[#allocation2 + $0x1e0] sm:$0xff]
    %v149 = vld [vmem:[#allocation2 + $0x1e8] sm:$0xff]
    %v150 = vld [vmem:[#allocation2 + $0x1f0] sm:$0xff]
    %v151 = vld [vmem:[#allocation2 + $0x1f8] sm:$0xff]
    %v152 = vld [vmem:[#allocation2 + $0x200] sm:$0xff]
    %v153 = vld [vmem:[#allocation2 + $0x208] sm:$0xff]
    %v154 = vld [vmem:[#allocation2 + $0x210] sm:$0xff]
    %v155 = vld [vmem:[#allocation2 + $0x218] sm:$0xff]
    %v156 = vld [vmem:[#allocation2 + $0x220] sm:$0xff]
    %v157 = vld [vmem:[#allocation2 + $0x228] sm:$0xff]
    %v158 = vld [vmem:[#allocation2 + $0x230] sm:$0xff]
    %v159 = vld [vmem:[#allocation2 + $0x238] sm:$0xff]
    %v160 = vld [vmem:[#allocation2 + $0x240] sm:$0xff]
    %v161 = vld [vmem:[#allocation2 + $0x248] sm:$0xff]
    %v162 = vld [vmem:[#allocation2 + $0x250] sm:$0xff]
    %v163 = vld [vmem:[#allocation2 + $0x258] sm:$0xff]
    %v164 = vld [vmem:[#allocation2 + $0x260] sm:$0xff]
    %v165 = vld [vmem:[#allocation2 + $0x268] sm:$0xff]
    %v166 = vld [vmem:[#allocation2 + $0x270] sm:$0xff]
    %v167 = vld [vmem:[#allocation2 + $0x278] sm:$0xff]
    %v168 = vld [vmem:[#allocation2 + $0x280] sm:$0xff]
    %v169 = vld [vmem:[#allocation2 + $0x288] sm:$0xff]
    %v170 = vld [vmem:[#allocation2 + $0x290] sm:$0xff]
    %v171 = vld [vmem:[#allocation2 + $0x298] sm:$0xff]
    %v172 = vld [vmem:[#allocation2 + $0x2a0] sm:$0xff]
    %v173 = vld [vmem:[#allocation2 + $0x2a8] sm:$0xff]
    %v174 = vld [vmem:[#allocation2 + $0x2b0] sm:$0xff]
    %v175 = vld [vmem:[#allocation2 + $0x2b8] sm:$0xff]
    %v176 = vld [vmem:[#allocation2 + $0x2c0] sm:$0xff]
    %v177 = vld [vmem:[#allocation2 + $0x2c8] sm:$0xff]
    %v178 = vld [vmem:[#allocation2 + $0x2d0] sm:$0xff]
    %v179 = vld [vmem:[#allocation2 + $0x2d8] sm:$0xff]
    %v180 = vld [vmem:[#allocation2 + $0x2e0] sm:$0xff]
    %v181 = vld [vmem:[#allocation2 + $0x2e8] sm:$0xff]
    %v182 = vld [vmem:[#allocation2 + $0x2f0] sm:$0xff]
    %v183 = vld [vmem:[#allocation2 + $0x2f8] sm:$0xff]
    %v184 = vld [vmem:[#allocation2 + $0x300] sm:$0xff]
    %v185 = vld [vmem:[#allocation2 + $0x308] sm:$0xff]
    %v186 = vld [vmem:[#allocation2 + $0x310] sm:$0xff]
    %v187 = vld [vmem:[#allocation2 + $0x318] sm:$0xff]
    %v188 = vld [vmem:[#allocation2 + $0x320] sm:$0xff]
    %v189 = vld [vmem:[#allocation2 + $0x328] sm:$0xff]
    %v190 = vld [vmem:[#allocation2 + $0x330] sm:$0xff]
    %v191 = vld [vmem:[#allocation2 + $0x338] sm:$0xff]
    %v192 = vld [vmem:[#allocation2 + $0x340] sm:$0xff]
    %v193 = vld [vmem:[#allocation2 + $0x348] sm:$0xff]
    %v194 = vld [vmem:[#allocation2 + $0x350] sm:$0xff]
    %v195 = vld [vmem:[#allocation2 + $0x358] sm:$0xff]
    %v196 = vld [vmem:[#allocation2 + $0x360] sm:$0xff]
    %v197 = vld [vmem:[#allocation2 + $0x368] sm:$0xff]
    %v198 = vld [vmem:[#allocation2 + $0x370] sm:$0xff]
    %v199 = vld [vmem:[#allocation2 + $0x378] sm:$0xff]
    %v200 = vld [vmem:[#allocation2 + $0x380] sm:$0xff]
    %v201 = vld [vmem:[#allocation2 + $0x388] sm:$0xff]
    %v202 = vld [vmem:[#allocation2 + $0x390] sm:$0xff]
    %v203 = vld [vmem:[#allocation2 + $0x398] sm:$0xff]
    %v204 = vld [vmem:[#allocation2 + $0x3a0] sm:$0xff]
    %v205 = vld [vmem:[#allocation2 + $0x3a8] sm:$0xff]
    %v206 = vld [vmem:[#allocation2 + $0x3b0] sm:$0xff]
    %v207 = vld [vmem:[#allocation2 + $0x3b8] sm:$0xff]
    %v208 = vld [vmem:[#allocation2 + $0x3c0] sm:$0xff]
    %v209 = vld [vmem:[#allocation2 + $0x3c8] sm:$0xff]
    %v210 = vld [vmem:[#allocation2 + $0x3d0] sm:$0xff]
    %v211 = vld [vmem:[#allocation2 + $0x3d8] sm:$0xff]
    %v212 = vld [vmem:[#allocation2 + $0x3e0] sm:$0xff]
    %v213 = vld [vmem:[#allocation2 + $0x3e8] sm:$0xff]
    %v214 = vld [vmem:[#allocation2 + $0x3f0] sm:$0xff]
    %v215 = vld [vmem:[#allocation2 + $0x3f8] sm:$0xff]
    %v216 = vadd.f32 %v88, %v96
    %v217 = vrot.slane %v216, 4
    %v218 = vadd.f32 %v216, %v217
    %v219 = vrot.slane %v218, 2
    %v220 = vadd.f32 %v218, %v219
    %v221 = vrot.slane %v220, 1
    %v222 = vadd.f32 %v220, %v221
    %v223 = vadd.f32 %v89, %v97
    %v224 = vrot.slane %v223, 4
    %v225 = vadd.f32 %v223, %v224
    %v226 = vrot.slane %v225, 2
    %v227 = vadd.f32 %v225, %v226
    %v228 = vrot.slane %v227, 1
    %v229 = vadd.f32 %v227, %v228
    %v230 = vadd.f32 %v90, %v98
    %v231 = vrot.slane %v230, 4
    %v232 = vadd.f32 %v230, %v231
    %v233 = vrot.slane %v232, 2
    %v234 = vadd.f32 %v232, %v233
    %v235 = vrot.slane %v234, 1
    %v236 = vadd.f32 %v234, %v235
    %v237 = vadd.f32 %v91, %v99
    %v238 = vrot.slane %v237, 4
    %v239 = vadd.f32 %v237, %v238
    %v240 = vrot.slane %v239, 2
    %v241 = vadd.f32 %v239, %v240
    %v242 = vrot.slane %v241, 1
    %v243 = vadd.f32 %v241, %v242
    %v244 = vadd.f32 %v92, %v100
    %v245 = vrot.slane %v244, 4
    %v246 = vadd.f32 %v244, %v245
    %v247 = vrot.slane %v246, 2
    %v248 = vadd.f32 %v246, %v247
    %v249 = vrot.slane %v248, 1
    %v250 = vadd.f32 %v248, %v249
    %v251 = vadd.f32 %v93, %v101
    %v252 = vrot.slane %v251, 4
    %v253 = vadd.f32 %v251, %v252
    %v254 = vrot.slane %v253, 2
    %v255 = vadd.f32 %v253, %v254
    %v256 = vrot.slane %v255, 1
    %v257 = vadd.f32 %v255, %v256
    %v258 = vadd.f32 %v94, %v102
    %v259 = vrot.slane %v258, 4
    %v260 = vadd.f32 %v258, %v259
    %v261 = vrot.slane %v260, 2
    %v262 = vadd.f32 %v260, %v261
    %v263 = vrot.slane %v262, 1
    %v264 = vadd.f32 %v262, %v263
    %v265 = vadd.f32 %v95, %v103
    %v266 = vrot.slane %v265, 4
    %v267 = vadd.f32 %v265, %v266
    %v268 = vrot.slane %v267, 2
    %v269 = vadd.f32 %v267, %v268
    %v270 = vrot.slane %v269, 1
    %v271 = vadd.f32 %v269, %v270
    %v272 = vadd.f32 %v104, %v112
    %v273 = vrot.slane %v272, 4
    %v274 = vadd.f32 %v272, %v273
    %v275 = vrot.slane %v274, 2
    %v276 = vadd.f32 %v274, %v275
    %v277 = vrot.slane %v276, 1
    %v278 = vadd.f32 %v276, %v277
    %v279 = vadd.f32 %v105, %v113
    %v280 = vrot.slane %v279, 4
    %v281 = vadd.f32 %v279, %v280
    %v282 = vrot.slane %v281, 2
    %v283 = vadd.f32 %v281, %v282
    %v284 = vrot.slane %v283, 1
    %v285 = vadd.f32 %v283, %v284
    %v286 = vadd.f32 %v106, %v114
    %v287 = vrot.slane %v286, 4
    %v288 = vadd.f32 %v286, %v287
    %v289 = vrot.slane %v288, 2
    %v290 = vadd.f32 %v288, %v289
    %v291 = vrot.slane %v290, 1
    %v292 = vadd.f32 %v290, %v291
    %v293 = vadd.f32 %v107, %v115
    %v294 = vrot.slane %v293, 4
    %v295 = vadd.f32 %v293, %v294
    %v296 = vrot.slane %v295, 2
    %v297 = vadd.f32 %v295, %v296
    %v298 = vrot.slane %v297, 1
    %v299 = vadd.f32 %v297, %v298
    %v300 = vadd.f32 %v108, %v116
    %v301 = vrot.slane %v300, 4
    %v302 = vadd.f32 %v300, %v301
    %v303 = vrot.slane %v302, 2
    %v304 = vadd.f32 %v302, %v303
    %v305 = vrot.slane %v304, 1
    %v306 = vadd.f32 %v304, %v305
    %v307 = vadd.f32 %v109, %v117
    %v308 = vrot.slane %v307, 4
    %v309 = vadd.f32 %v307, %v308
    %v310 = vrot.slane %v309, 2
    %v311 = vadd.f32 %v309, %v310
    %v312 = vrot.slane %v311, 1
    %v313 = vadd.f32 %v311, %v312
    %v314 = vadd.f32 %v110, %v118
    %v315 = vrot.slane %v314, 4
    %v316 = vadd.f32 %v314, %v315
    %v317 = vrot.slane %v316, 2
    %v318 = vadd.f32 %v316, %v317
    %v319 = vrot.slane %v318, 1
    %v320 = vadd.f32 %v318, %v319
    %v321 = vadd.f32 %v111, %v119
    %v322 = vrot.slane %v321, 4
    %v323 = vadd.f32 %v321, %v322
    %v324 = vrot.slane %v323, 2
    %v325 = vadd.f32 %v323, %v324
    %v326 = vrot.slane %v325, 1
    %v327 = vadd.f32 %v325, %v326
    %v328 = vadd.f32 %v120, %v128
    %v329 = vrot.slane %v328, 4
    %v330 = vadd.f32 %v328, %v329
    %v331 = vrot.slane %v330, 2
    %v332 = vadd.f32 %v330, %v331
    %v333 = vrot.slane %v332, 1
    %v334 = vadd.f32 %v332, %v333
    %v335 = vadd.f32 %v121, %v129
    %v336 = vrot.slane %v335, 4
    %v337 = vadd.f32 %v335, %v336
    %v338 = vrot.slane %v337, 2
    %v339 = vadd.f32 %v337, %v338
    %v340 = vrot.slane %v339, 1
    %v341 = vadd.f32 %v339, %v340
    %v342 = vadd.f32 %v122, %v130
    %v343 = vrot.slane %v342, 4
    %v344 = vadd.f32 %v342, %v343
    %v345 = vrot.slane %v344, 2
    %v346 = vadd.f32 %v344, %v345
    %v347 = vrot.slane %v346, 1
    %v348 = vadd.f32 %v346, %v347
    %v349 = vadd.f32 %v123, %v131
    %v350 = vrot.slane %v349, 4
    %v351 = vadd.f32 %v349, %v350
    %v352 = vrot.slane %v351, 2
    %v353 = vadd.f32 %v351, %v352
    %v354 = vrot.slane %v353, 1
    %v355 = vadd.f32 %v353, %v354
    %v356 = vadd.f32 %v124, %v132
    %v357 = vrot.slane %v356, 4
    %v358 = vadd.f32 %v356, %v357
    %v359 = vrot.slane %v358, 2
    %v360 = vadd.f32 %v358, %v359
    %v361 = vrot.slane %v360, 1
    %v362 = vadd.f32 %v360, %v361
    %v363 = vadd.f32 %v125, %v133
    %v364 = vrot.slane %v363, 4
    %v365 = vadd.f32 %v363, %v364
    %v366 = vrot.slane %v365, 2
    %v367 = vadd.f32 %v365, %v366
    %v368 = vrot.slane %v367, 1
    %v369 = vadd.f32 %v367, %v368
    %v370 = vadd.f32 %v126, %v134
    %v371 = vrot.slane %v370, 4
    %v372 = vadd.f32 %v370, %v371
    %v373 = vrot.slane %v372, 2
    %v374 = vadd.f32 %v372, %v373
    %v375 = vrot.slane %v374, 1
    %v376 = vadd.f32 %v374, %v375
    %v377 = vadd.f32 %v127, %v135
    %v378 = vrot.slane %v377, 4
    %v379 = vadd.f32 %v377, %v378
    %v380 = vrot.slane %v379, 2
    %v381 = vadd.f32 %v379, %v380
    %v382 = vrot.slane %v381, 1
    %v383 = vadd.f32 %v381, %v382
    %v384 = vadd.f32 %v136, %v144
    %v385 = vrot.slane %v384, 4
    %v386 = vadd.f32 %v384, %v385
    %v387 = vrot.slane %v386, 2
    %v388 = vadd.f32 %v386, %v387
    %v389 = vrot.slane %v388, 1
    %v390 = vadd.f32 %v388, %v389
    %v391 = vadd.f32 %v137, %v145
    %v392 = vrot.slane %v391, 4
    %v393 = vadd.f32 %v391, %v392
    %v394 = vrot.slane %v393, 2
    %v395 = vadd.f32 %v393, %v394
    %v396 = vrot.slane %v395, 1
    %v397 = vadd.f32 %v395, %v396
    %v398 = vadd.f32 %v138, %v146
    %v399 = vrot.slane %v398, 4
    %v400 = vadd.f32 %v398, %v399
    %v401 = vrot.slane %v400, 2
    %v402 = vadd.f32 %v400, %v401
    %v403 = vrot.slane %v402, 1
    %v404 = vadd.f32 %v402, %v403
    %v405 = vadd.f32 %v139, %v147
    %v406 = vrot.slane %v405, 4
    %v407 = vadd.f32 %v405, %v406
    %v408 = vrot.slane %v407, 2
    %v409 = vadd.f32 %v407, %v408
    %v410 = vrot.slane %v409, 1
    %v411 = vadd.f32 %v409, %v410
    %v412 = vadd.f32 %v140, %v148
    %v413 = vrot.slane %v412, 4
    %v414 = vadd.f32 %v412, %v413
    %v415 = vrot.slane %v414, 2
    %v416 = vadd.f32 %v414, %v415
    %v417 = vrot.slane %v416, 1
    %v418 = vadd.f32 %v416, %v417
    %v419 = vadd.f32 %v141, %v149
    %v420 = vrot.slane %v419, 4
    %v421 = vadd.f32 %v419, %v420
    %v422 = vrot.slane %v421, 2
    %v423 = vadd.f32 %v421, %v422
    %v424 = vrot.slane %v423, 1
    %v425 = vadd.f32 %v423, %v424
    %v426 = vadd.f32 %v142, %v150
    %v427 = vrot.slane %v426, 4
    %v428 = vadd.f32 %v426, %v427
    %v429 = vrot.slane %v428, 2
    %v430 = vadd.f32 %v428, %v429
    %v431 = vrot.slane %v430, 1
    %v432 = vadd.f32 %v430, %v431
    %v433 = vadd.f32 %v143, %v151
    %v434 = vrot.slane %v433, 4
    %v435 = vadd.f32 %v433, %v434
    %v436 = vrot.slane %v435, 2
    %v437 = vadd.f32 %v435, %v436
    %v438 = vrot.slane %v437, 1
    %v439 = vadd.f32 %v437, %v438
    %v440 = vadd.f32 %v152, %v160
    %v441 = vrot.slane %v440, 4
    %v442 = vadd.f32 %v440, %v441
    %v443 = vrot.slane %v442, 2
    %v444 = vadd.f32 %v442, %v443
    %v445 = vrot.slane %v444, 1
    %v446 = vadd.f32 %v444, %v445
    %v447 = vadd.f32 %v153, %v161
    %v448 = vrot.slane %v447, 4
    %v449 = vadd.f32 %v447, %v448
    %v450 = vrot.slane %v449, 2
    %v451 = vadd.f32 %v449, %v450
    %v452 = vrot.slane %v451, 1
    %v453 = vadd.f32 %v451, %v452
    %v454 = vadd.f32 %v154, %v162
    %v455 = vrot.slane %v454, 4
    %v456 = vadd.f32 %v454, %v455
    %v457 = vrot.slane %v456, 2
    %v458 = vadd.f32 %v456, %v457
    %v459 = vrot.slane %v458, 1
    %v460 = vadd.f32 %v458, %v459
    %v461 = vadd.f32 %v155, %v163
    %v462 = vrot.slane %v461, 4
    %v463 = vadd.f32 %v461, %v462
    %v464 = vrot.slane %v463, 2
    %v465 = vadd.f32 %v463, %v464
    %v466 = vrot.slane %v465, 1
    %v467 = vadd.f32 %v465, %v466
    %v468 = vadd.f32 %v156, %v164
    %v469 = vrot.slane %v468, 4
    %v470 = vadd.f32 %v468, %v469
    %v471 = vrot.slane %v470, 2
    %v472 = vadd.f32 %v470, %v471
    %v473 = vrot.slane %v472, 1
    %v474 = vadd.f32 %v472, %v473
    %v475 = vadd.f32 %v157, %v165
    %v476 = vrot.slane %v475, 4
    %v477 = vadd.f32 %v475, %v476
    %v478 = vrot.slane %v477, 2
    %v479 = vadd.f32 %v477, %v478
    %v480 = vrot.slane %v479, 1
    %v481 = vadd.f32 %v479, %v480
    %v482 = vadd.f32 %v158, %v166
    %v483 = vrot.slane %v482, 4
    %v484 = vadd.f32 %v482, %v483
    %v485 = vrot.slane %v484, 2
    %v486 = vadd.f32 %v484, %v485
    %v487 = vrot.slane %v486, 1
    %v488 = vadd.f32 %v486, %v487
    %v489 = vadd.f32 %v159, %v167
    %v490 = vrot.slane %v489, 4
    %v491 = vadd.f32 %v489, %v490
    %v492 = vrot.slane %v491, 2
    %v493 = vadd.f32 %v491, %v492
    %v494 = vrot.slane %v493, 1
    %v495 = vadd.f32 %v493, %v494
    %v496 = vadd.f32 %v168, %v176
    %v497 = vrot.slane %v496, 4
    %v498 = vadd.f32 %v496, %v497
    %v499 = vrot.slane %v498, 2
    %v500 = vadd.f32 %v498, %v499
    %v501 = vrot.slane %v500, 1
    %v502 = vadd.f32 %v500, %v501
    %v503 = vadd.f32 %v169, %v177
    %v504 = vrot.slane %v503, 4
    %v505 = vadd.f32 %v503, %v504
    %v506 = vrot.slane %v505, 2
    %v507 = vadd.f32 %v505, %v506
    %v508 = vrot.slane %v507, 1
    %v509 = vadd.f32 %v507, %v508
    %v510 = vadd.f32 %v170, %v178
    %v511 = vrot.slane %v510, 4
    %v512 = vadd.f32 %v510, %v511
    %v513 = vrot.slane %v512, 2
    %v514 = vadd.f32 %v512, %v513
    %v515 = vrot.slane %v514, 1
    %v516 = vadd.f32 %v514, %v515
    %v517 = vadd.f32 %v171, %v179
    %v518 = vrot.slane %v517, 4
    %v519 = vadd.f32 %v517, %v518
    %v520 = vrot.slane %v519, 2
    %v521 = vadd.f32 %v519, %v520
    %v522 = vrot.slane %v521, 1
    %v523 = vadd.f32 %v521, %v522
    %v524 = vadd.f32 %v172, %v180
    %v525 = vrot.slane %v524, 4
    %v526 = vadd.f32 %v524, %v525
    %v527 = vrot.slane %v526, 2
    %v528 = vadd.f32 %v526, %v527
    %v529 = vrot.slane %v528, 1
    %v530 = vadd.f32 %v528, %v529
    %v531 = vadd.f32 %v173, %v181
    %v532 = vrot.slane %v531, 4
    %v533 = vadd.f32 %v531, %v532
    %v534 = vrot.slane %v533, 2
    %v535 = vadd.f32 %v533, %v534
    %v536 = vrot.slane %v535, 1
    %v537 = vadd.f32 %v535, %v536
    %v538 = vadd.f32 %v174, %v182
    %v539 = vrot.slane %v538, 4
    %v540 = vadd.f32 %v538, %v539
    %v541 = vrot.slane %v540, 2
    %v542 = vadd.f32 %v540, %v541
    %v543 = vrot.slane %v542, 1
    %v544 = vadd.f32 %v542, %v543
    %v545 = vadd.f32 %v175, %v183
    %v546 = vrot.slane %v545, 4
    %v547 = vadd.f32 %v545, %v546
    %v548 = vrot.slane %v547, 2
    %v549 = vadd.f32 %v547, %v548
    %v550 = vrot.slane %v549, 1
    %v551 = vadd.f32 %v549, %v550
    %v552 = vadd.f32 %v184, %v192
    %v553 = vrot.slane %v552, 4
    %v554 = vadd.f32 %v552, %v553
    %v555 = vrot.slane %v554, 2
    %v556 = vadd.f32 %v554, %v555
    %v557 = vrot.slane %v556, 1
    %v558 = vadd.f32 %v556, %v557
    %v559 = vadd.f32 %v185, %v193
    %v560 = vrot.slane %v559, 4
    %v561 = vadd.f32 %v559, %v560
    %v562 = vrot.slane %v561, 2
    %v563 = vadd.f32 %v561, %v562
    %v564 = vrot.slane %v563, 1
    %v565 = vadd.f32 %v563, %v564
    %v566 = vadd.f32 %v186, %v194
    %v567 = vrot.slane %v566, 4
    %v568 = vadd.f32 %v566, %v567
    %v569 = vrot.slane %v568, 2
    %v570 = vadd.f32 %v568, %v569
    %v571 = vrot.slane %v570, 1
    %v572 = vadd.f32 %v570, %v571
    %v573 = vadd.f32 %v187, %v195
    %v574 = vrot.slane %v573, 4
    %v575 = vadd.f32 %v573, %v574
    %v576 = vrot.slane %v575, 2
    %v577 = vadd.f32 %v575, %v576
    %v578 = vrot.slane %v577, 1
    %v579 = vadd.f32 %v577, %v578
    %v580 = vadd.f32 %v188, %v196
    %v581 = vrot.slane %v580, 4
    %v582 = vadd.f32 %v580, %v581
    %v583 = vrot.slane %v582, 2
    %v584 = vadd.f32 %v582, %v583
    %v585 = vrot.slane %v584, 1
    %v586 = vadd.f32 %v584, %v585
    %v587 = vadd.f32 %v189, %v197
    %v588 = vrot.slane %v587, 4
    %v589 = vadd.f32 %v587, %v588
    %v590 = vrot.slane %v589, 2
    %v591 = vadd.f32 %v589, %v590
    %v592 = vrot.slane %v591, 1
    %v593 = vadd.f32 %v591, %v592
    %v594 = vadd.f32 %v190, %v198
    %v595 = vrot.slane %v594, 4
    %v596 = vadd.f32 %v594, %v595
    %v597 = vrot.slane %v596, 2
    %v598 = vadd.f32 %v596, %v597
    %v599 = vrot.slane %v598, 1
    %v600 = vadd.f32 %v598, %v599
    %v601 = vadd.f32 %v191, %v199
    %v602 = vrot.slane %v601, 4
    %v603 = vadd.f32 %v601, %v602
    %v604 = vrot.slane %v603, 2
    %v605 = vadd.f32 %v603, %v604
    %v606 = vrot.slane %v605, 1
    %v607 = vadd.f32 %v605, %v606
    %v608 = vadd.f32 %v200, %v208
    %v609 = vrot.slane %v608, 4
    %v610 = vadd.f32 %v608, %v609
    %v611 = vrot.slane %v610, 2
    %v612 = vadd.f32 %v610, %v611
    %v613 = vrot.slane %v612, 1
    %v614 = vadd.f32 %v612, %v613
    %v615 = vadd.f32 %v201, %v209
    %v616 = vrot.slane %v615, 4
    %v617 = vadd.f32 %v615, %v616
    %v618 = vrot.slane %v617, 2
    %v619 = vadd.f32 %v617, %v618
    %v620 = vrot.slane %v619, 1
    %v621 = vadd.f32 %v619, %v620
    %v622 = vadd.f32 %v202, %v210
    %v623 = vrot.slane %v622, 4
    %v624 = vadd.f32 %v622, %v623
    %v625 = vrot.slane %v624, 2
    %v626 = vadd.f32 %v624, %v625
    %v627 = vrot.slane %v626, 1
    %v628 = vadd.f32 %v626, %v627
    %v629 = vadd.f32 %v203, %v211
    %v630 = vrot.slane %v629, 4
    %v631 = vadd.f32 %v629, %v630
    %v632 = vrot.slane %v631, 2
    %v633 = vadd.f32 %v631, %v632
    %v634 = vrot.slane %v633, 1
    %v635 = vadd.f32 %v633, %v634
    %v636 = vadd.f32 %v204, %v212
    %v637 = vrot.slane %v636, 4
    %v638 = vadd.f32 %v636, %v637
    %v639 = vrot.slane %v638, 2
    %v640 = vadd.f32 %v638, %v639
    %v641 = vrot.slane %v640, 1
    %v642 = vadd.f32 %v640, %v641
    %v643 = vadd.f32 %v205, %v213
    %v644 = vrot.slane %v643, 4
    %v645 = vadd.f32 %v643, %v644
    %v646 = vrot.slane %v645, 2
    %v647 = vadd.f32 %v645, %v646
    %v648 = vrot.slane %v647, 1
    %v649 = vadd.f32 %v647, %v648
    %v650 = vadd.f32 %v206, %v214
    %v651 = vrot.slane %v650, 4
    %v652 = vadd.f32 %v650, %v651
    %v653 = vrot.slane %v652, 2
    %v654 = vadd.f32 %v652, %v653
    %v655 = vrot.slane %v654, 1
    %v656 = vadd.f32 %v654, %v655
    %v657 = vadd.f32 %v207, %v215
    %v658 = vrot.slane %v657, 4
    %v659 = vadd.f32 %v657, %v658
    %v660 = vrot.slane %v659, 2
    %v661 = vadd.f32 %v659, %v660
    %v662 = vrot.slane %v661, 1
    %v663 = vadd.f32 %v661, %v662
    %v664 = vrcp.pop 16.0
    %v665 = vmul.f32 %v222, %v664
    %v666 = vmul.f32 %v229, %v664
    %v667 = vmul.f32 %v236, %v664
    %v668 = vmul.f32 %v243, %v664
    %v669 = vmul.f32 %v250, %v664
    %v670 = vmul.f32 %v257, %v664
    %v671 = vmul.f32 %v264, %v664
    %v672 = vmul.f32 %v271, %v664
    %v673 = vmul.f32 %v278, %v664
    %v674 = vmul.f32 %v285, %v664
    %v675 = vmul.f32 %v292, %v664
    %v676 = vmul.f32 %v299, %v664
    %v677 = vmul.f32 %v306, %v664
    %v678 = vmul.f32 %v313, %v664
    %v679 = vmul.f32 %v320, %v664
    %v680 = vmul.f32 %v327, %v664
    %v681 = vmul.f32 %v334, %v664
    %v682 = vmul.f32 %v341, %v664
    %v683 = vmul.f32 %v348, %v664
    %v684 = vmul.f32 %v355, %v664
    %v685 = vmul.f32 %v362, %v664
    %v686 = vmul.f32 %v369, %v664
    %v687 = vmul.f32 %v376, %v664
    %v688 = vmul.f32 %v383, %v664
    %v689 = vmul.f32 %v390, %v664
    %v690 = vmul.f32 %v397, %v664
    %v691 = vmul.f32 %v404, %v664
    %v692 = vmul.f32 %v411, %v664
    %v693 = vmul.f32 %v418, %v664
    %v694 = vmul.f32 %v425, %v664
    %v695 = vmul.f32 %v432, %v664
    %v696 = vmul.f32 %v439, %v664
    %v697 = vmul.f32 %v446, %v664
    %v698 = vmul.f32 %v453, %v664
    %v699 = vmul.f32 %v460, %v664
    %v700 = vmul.f32 %v467, %v664
    %v701 = vmul.f32 %v474, %v664
    %v702 = vmul.f32 %v481, %v664
    %v703 = vmul.f32 %v488, %v664
    %v704 = vmul.f32 %v495, %v664
    %v705 = vmul.f32 %v502, %v664
    %v706 = vmul.f32 %v509, %v664
    %v707 = vmul.f32 %v516, %v664
    %v708 = vmul.f32 %v523, %v664
    %v709 = vmul.f32 %v530, %v664
    %v710 = vmul.f32 %v537, %v664
    %v711 = vmul.f32 %v544, %v664
    %v712 = vmul.f32 %v551, %v664
    %v713 = vmul.f32 %v558, %v664
    %v714 = vmul.f32 %v565, %v664
    %v715 = vmul.f32 %v572, %v664
    %v716 = vmul.f32 %v579, %v664
    %v717 = vmul.f32 %v586, %v664
    %v718 = vmul.f32 %v593, %v664
    %v719 = vmul.f32 %v600, %v664
    %v720 = vmul.f32 %v607, %v664
    %v721 = vmul.f32 %v614, %v664
    %v722 = vmul.f32 %v621, %v664
    %v723 = vmul.f32 %v628, %v664
    %v724 = vmul.f32 %v635, %v664
    %v725 = vmul.f32 %v642, %v664
    %v726 = vmul.f32 %v649, %v664
    %v727 = vmul.f32 %v656, %v664
    %v728 = vmul.f32 %v663, %v664
    %v729 = vpack.c.bf16 %v665, %v665
    %v730 = vpack.c.bf16 %v666, %v666
    %v731 = vpack.c.bf16 %v667, %v667
    %v732 = vpack.c.bf16 %v668, %v668
    %v733 = vpack.c.bf16 %v669, %v669
    %v734 = vpack.c.bf16 %v670, %v670
    %v735 = vpack.c.bf16 %v671, %v671
    %v736 = vpack.c.bf16 %v672, %v672
    %v737 = vpack.c.bf16 %v673, %v673
    %v738 = vpack.c.bf16 %v674, %v674
    %v739 = vpack.c.bf16 %v675, %v675
    %v740 = vpack.c.bf16 %v676, %v676
    %v741 = vpack.c.bf16 %v677, %v677
    %v742 = vpack.c.bf16 %v678, %v678
    %v743 = vpack.c.bf16 %v679, %v679
    %v744 = vpack.c.bf16 %v680, %v680
    %v745 = vpack.c.bf16 %v681, %v681
    %v746 = vpack.c.bf16 %v682, %v682
    %v747 = vpack.c.bf16 %v683, %v683
    %v748 = vpack.c.bf16 %v684, %v684
    %v749 = vpack.c.bf16 %v685, %v685
    %v750 = vpack.c.bf16 %v686, %v686
    %v751 = vpack.c.bf16 %v687, %v687
    %v752 = vpack.c.bf16 %v688, %v688
    %v753 = vpack.c.bf16 %v689, %v689
    %v754 = vpack.c.bf16 %v690, %v690
    %v755 = vpack.c.bf16 %v691, %v691
    %v756 = vpack.c.bf16 %v692, %v692
    %v757 = vpack.c.bf16 %v693, %v693
    %v758 = vpack.c.bf16 %v694, %v694
    %v759 = vpack.c.bf16 %v695, %v695
    %v760 = vpack.c.bf16 %v696, %v696
    %v761 = vpack.c.bf16 %v697, %v697
    %v762 = vpack.c.bf16 %v698, %v698
    %v763 = vpack.c.bf16 %v699, %v699
    %v764 = vpack.c.bf16 %v700, %v700
    %v765 = vpack.c.bf16 %v701, %v701
    %v766 = vpack.c.bf16 %v702, %v702
    %v767 = vpack.c.bf16 %v703, %v703
    %v768 = vpack.c.bf16 %v704, %v704
    %v769 = vpack.c.bf16 %v705, %v705
    %v770 = vpack.c.bf16 %v706, %v706
    %v771 = vpack.c.bf16 %v707, %v707
    %v772 = vpack.c.bf16 %v708, %v708
    %v773 = vpack.c.bf16 %v709, %v709
    %v774 = vpack.c.bf16 %v710, %v710
    %v775 = vpack.c.bf16 %v711, %v711
    %v776 = vpack.c.bf16 %v712, %v712
    %v777 = vpack.c.bf16 %v713, %v713
    %v778 = vpack.c.bf16 %v714, %v714
    %v779 = vpack.c.bf16 %v715, %v715
    %v780 = vpack.c.bf16 %v716, %v716
    %v781 = vpack.c.bf16 %v717, %v717
    %v782 = vpack.c.bf16 %v718, %v718
    %v783 = vpack.c.bf16 %v719, %v719
    %v784 = vpack.c.bf16 %v720, %v720
    %v785 = vpack.c.bf16 %v721, %v721
    %v786 = vpack.c.bf16 %v722, %v722
    %v787 = vpack.c.bf16 %v723, %v723
    %v788 = vpack.c.bf16 %v724, %v724
    %v789 = vpack.c.bf16 %v725, %v725
    %v790 = vpack.c.bf16 %v726, %v726
    %v791 = vpack.c.bf16 %v727, %v727
    %v792 = vpack.c.bf16 %v728, %v728
    %v793 = vld [vmem:[#allocation4] sm:$0xff]
    %v794 = vld [vmem:[#allocation4 + $0x8] sm:$0xff]
    %v795 = vld [vmem:[#allocation4 + $0x10] sm:$0xff]
    %v796 = vld [vmem:[#allocation4 + $0x18] sm:$0xff]
    %v797 = vld [vmem:[#allocation4 + $0x20] sm:$0xff]
    %v798 = vld [vmem:[#allocation4 + $0x28] sm:$0xff]
    %v799 = vld [vmem:[#allocation4 + $0x30] sm:$0xff]
    %v800 = vld [vmem:[#allocation4 + $0x38] sm:$0xff]
    %v801 = vld [vmem:[#allocation4 + $0x40] sm:$0xff]
    %v802 = vld [vmem:[#allocation4 + $0x48] sm:$0xff]
    %v803 = vld [vmem:[#allocation4 + $0x50] sm:$0xff]
    %v804 = vld [vmem:[#allocation4 + $0x58] sm:$0xff]
    %v805 = vld [vmem:[#allocation4 + $0x60] sm:$0xff]
    %v806 = vld [vmem:[#allocation4 + $0x68] sm:$0xff]
    %v807 = vld [vmem:[#allocation4 + $0x70] sm:$0xff]
    %v808 = vld [vmem:[#allocation4 + $0x78] sm:$0xff]
    %v809 = vld [vmem:[#allocation4 + $0x80] sm:$0xff]
    %v810 = vld [vmem:[#allocation4 + $0x88] sm:$0xff]
    %v811 = vld [vmem:[#allocation4 + $0x90] sm:$0xff]
    %v812 = vld [vmem:[#allocation4 + $0x98] sm:$0xff]
    %v813 = vld [vmem:[#allocation4 + $0xa0] sm:$0xff]
    %v814 = vld [vmem:[#allocation4 + $0xa8] sm:$0xff]
    %v815 = vld [vmem:[#allocation4 + $0xb0] sm:$0xff]
    %v816 = vld [vmem:[#allocation4 + $0xb8] sm:$0xff]
    %v817 = vld [vmem:[#allocation4 + $0xc0] sm:$0xff]
    %v818 = vld [vmem:[#allocation4 + $0xc8] sm:$0xff]
    %v819 = vld [vmem:[#allocation4 + $0xd0] sm:$0xff]
    %v820 = vld [vmem:[#allocation4 + $0xd8] sm:$0xff]
    %v821 = vld [vmem:[#allocation4 + $0xe0] sm:$0xff]
    %v822 = vld [vmem:[#allocation4 + $0xe8] sm:$0xff]
    %v823 = vld [vmem:[#allocation4 + $0xf0] sm:$0xff]
    %v824 = vld [vmem:[#allocation4 + $0xf8] sm:$0xff]
    %v825 = vld [vmem:[#allocation4 + $0x100] sm:$0xff]
    %v826 = vld [vmem:[#allocation4 + $0x108] sm:$0xff]
    %v827 = vld [vmem:[#allocation4 + $0x110] sm:$0xff]
    %v828 = vld [vmem:[#allocation4 + $0x118] sm:$0xff]
    %v829 = vld [vmem:[#allocation4 + $0x120] sm:$0xff]
    %v830 = vld [vmem:[#allocation4 + $0x128] sm:$0xff]
    %v831 = vld [vmem:[#allocation4 + $0x130] sm:$0xff]
    %v832 = vld [vmem:[#allocation4 + $0x138] sm:$0xff]
    %v833 = vld [vmem:[#allocation4 + $0x140] sm:$0xff]
    %v834 = vld [vmem:[#allocation4 + $0x148] sm:$0xff]
    %v835 = vld [vmem:[#allocation4 + $0x150] sm:$0xff]
    %v836 = vld [vmem:[#allocation4 + $0x158] sm:$0xff]
    %v837 = vld [vmem:[#allocation4 + $0x160] sm:$0xff]
    %v838 = vld [vmem:[#allocation4 + $0x168] sm:$0xff]
    %v839 = vld [vmem:[#allocation4 + $0x170] sm:$0xff]
    %v840 = vld [vmem:[#allocation4 + $0x178] sm:$0xff]
    %v841 = vld [vmem:[#allocation4 + $0x180] sm:$0xff]
    %v842 = vld [vmem:[#allocation4 + $0x188] sm:$0xff]
    %v843 = vld [vmem:[#allocation4 + $0x190] sm:$0xff]
    %v844 = vld [vmem:[#allocation4 + $0x198] sm:$0xff]
    %v845 = vld [vmem:[#allocation4 + $0x1a0] sm:$0xff]
    %v846 = vld [vmem:[#allocation4 + $0x1a8] sm:$0xff]
    %v847 = vld [vmem:[#allocation4 + $0x1b0] sm:$0xff]
    %v848 = vld [vmem:[#allocation4 + $0x1b8] sm:$0xff]
    %v849 = vld [vmem:[#allocation4 + $0x1c0] sm:$0xff]
    %v850 = vld [vmem:[#allocation4 + $0x1c8] sm:$0xff]
    %v851 = vld [vmem:[#allocation4 + $0x1d0] sm:$0xff]
    %v852 = vld [vmem:[#allocation4 + $0x1d8] sm:$0xff]
    %v853 = vld [vmem:[#allocation4 + $0x1e0] sm:$0xff]
    %v854 = vld [vmem:[#allocation4 + $0x1e8] sm:$0xff]
    %v855 = vld [vmem:[#allocation4 + $0x1f0] sm:$0xff]
    %v856 = vld [vmem:[#allocation4 + $0x1f8] sm:$0xff]
    %v857 = vld [vmem:[#allocation4 + $0x200] sm:$0xff]
    %v858 = vld [vmem:[#allocation4 + $0x208] sm:$0xff]
    %v859 = vld [vmem:[#allocation4 + $0x210] sm:$0xff]
    %v860 = vld [vmem:[#allocation4 + $0x218] sm:$0xff]
    %v861 = vld [vmem:[#allocation4 + $0x220] sm:$0xff]
    %v862 = vld [vmem:[#allocation4 + $0x228] sm:$0xff]
    %v863 = vld [vmem:[#allocation4 + $0x230] sm:$0xff]
    %v864 = vld [vmem:[#allocation4 + $0x238] sm:$0xff]
    %v865 = vld [vmem:[#allocation4 + $0x240] sm:$0xff]
    %v866 = vld [vmem:[#allocation4 + $0x248] sm:$0xff]
    %v867 = vld [vmem:[#allocation4 + $0x250] sm:$0xff]
    %v868 = vld [vmem:[#allocation4 + $0x258] sm:$0xff]
    %v869 = vld [vmem:[#allocation4 + $0x260] sm:$0xff]
    %v870 = vld [vmem:[#allocation4 + $0x268] sm:$0xff]
    %v871 = vld [vmem:[#allocation4 + $0x270] sm:$0xff]
    %v872 = vld [vmem:[#allocation4 + $0x278] sm:$0xff]
    %v873 = vld [vmem:[#allocation4 + $0x280] sm:$0xff]
    %v874 = vld [vmem:[#allocation4 + $0x288] sm:$0xff]
    %v875 = vld [vmem:[#allocation4 + $0x290] sm:$0xff]
    %v876 = vld [vmem:[#allocation4 + $0x298] sm:$0xff]
    %v877 = vld [vmem:[#allocation4 + $0x2a0] sm:$0xff]
    %v878 = vld [vmem:[#allocation4 + $0x2a8] sm:$0xff]
    %v879 = vld [vmem:[#allocation4 + $0x2b0] sm:$0xff]
    %v880 = vld [vmem:[#allocation4 + $0x2b8] sm:$0xff]
    %v881 = vld [vmem:[#allocation4 + $0x2c0] sm:$0xff]
    %v882 = vld [vmem:[#allocation4 + $0x2c8] sm:$0xff]
    %v883 = vld [vmem:[#allocation4 + $0x2d0] sm:$0xff]
    %v884 = vld [vmem:[#allocation4 + $0x2d8] sm:$0xff]
    %v885 = vld [vmem:[#allocation4 + $0x2e0] sm:$0xff]
    %v886 = vld [vmem:[#allocation4 + $0x2e8] sm:$0xff]
    %v887 = vld [vmem:[#allocation4 + $0x2f0] sm:$0xff]
    %v888 = vld [vmem:[#allocation4 + $0x2f8] sm:$0xff]
    %v889 = vld [vmem:[#allocation4 + $0x300] sm:$0xff]
    %v890 = vld [vmem:[#allocation4 + $0x308] sm:$0xff]
    %v891 = vld [vmem:[#allocation4 + $0x310] sm:$0xff]
    %v892 = vld [vmem:[#allocation4 + $0x318] sm:$0xff]
    %v893 = vld [vmem:[#allocation4 + $0x320] sm:$0xff]
    %v894 = vld [vmem:[#allocation4 + $0x328] sm:$0xff]
    %v895 = vld [vmem:[#allocation4 + $0x330] sm:$0xff]
    %v896 = vld [vmem:[#allocation4 + $0x338] sm:$0xff]
    %v897 = vld [vmem:[#allocation4 + $0x340] sm:$0xff]
    %v898 = vld [vmem:[#allocation4 + $0x348] sm:$0xff]
    %v899 = vld [vmem:[#allocation4 + $0x350] sm:$0xff]
    %v900 = vld [vmem:[#allocation4 + $0x358] sm:$0xff]
    %v901 = vld [vmem:[#allocation4 + $0x360] sm:$0xff]
    %v902 = vld [vmem:[#allocation4 + $0x368] sm:$0xff]
    %v903 = vld [vmem:[#allocation4 + $0x370] sm:$0xff]
    %v904 = vld [vmem:[#allocation4 + $0x378] sm:$0xff]
    %v905 = vld [vmem:[#allocation4 + $0x380] sm:$0xff]
    %v906 = vld [vmem:[#allocation4 + $0x388] sm:$0xff]
    %v907 = vld [vmem:[#allocation4 + $0x390] sm:$0xff]
    %v908 = vld [vmem:[#allocation4 + $0x398] sm:$0xff]
    %v909 = vld [vmem:[#allocation4 + $0x3a0] sm:$0xff]
    %v910 = vld [vmem:[#allocation4 + $0x3a8] sm:$0xff]
    %v911 = vld [vmem:[#allocation4 + $0x3b0] sm:$0xff]
    %v912 = vld [vmem:[#allocation4 + $0x3b8] sm:$0xff]
    %v913 = vld [vmem:[#allocation4 + $0x3c0] sm:$0xff]
    %v914 = vld [vmem:[#allocation4 + $0x3c8] sm:$0xff]
    %v915 = vld [vmem:[#allocation4 + $0x3d0] sm:$0xff]
    %v916 = vld [vmem:[#allocation4 + $0x3d8] sm:$0xff]
    %v917 = vld [vmem:[#allocation4 + $0x3e0] sm:$0xff]
    %v918 = vld [vmem:[#allocation4 + $0x3e8] sm:$0xff]
    %v919 = vld [vmem:[#allocation4 + $0x3f0] sm:$0xff]
    %v920 = vld [vmem:[#allocation4 + $0x3f8] sm:$0xff]
    %v921 = vld [vmem:[%s2] sm:$0x3]
    %v923 = vlaneseq
    %v924 = vshrl.u32 %v923, 7
    %v925 = vsub.s32 0, %v924
    %v926 = vrot.slane %v921, %v925
    %v927 = vlaneseq
    %v928 = vshrl.u32 %v927, 7
    %v929 = vsub.s32 1, %v928
    %v930 = vrot.slane %v921, %v929
    %v997 = vunpack.c.l.b16 %v729
    %v998 = vunpack.c.l.b16 %v730
    %v999 = vunpack.c.l.b16 %v731
    %v1000 = vunpack.c.l.b16 %v732
    %v1001 = vunpack.c.l.b16 %v733
    %v1002 = vunpack.c.l.b16 %v734
    %v1003 = vunpack.c.l.b16 %v735
    %v1004 = vunpack.c.l.b16 %v736
    %v1005 = vunpack.c.l.b16 %v737
    %v1006 = vunpack.c.l.b16 %v738
    %v1007 = vunpack.c.l.b16 %v739
    %v1008 = vunpack.c.l.b16 %v740
    %v1009 = vunpack.c.l.b16 %v741
    %v1010 = vunpack.c.l.b16 %v742
    %v1011 = vunpack.c.l.b16 %v743
    %v1012 = vunpack.c.l.b16 %v744
    %v1013 = vunpack.c.l.b16 %v745
    %v1014 = vunpack.c.l.b16 %v746
    %v1015 = vunpack.c.l.b16 %v747
    %v1016 = vunpack.c.l.b16 %v748
    %v1017 = vunpack.c.l.b16 %v749
    %v1018 = vunpack.c.l.b16 %v750
    %v1019 = vunpack.c.l.b16 %v751
    %v1020 = vunpack.c.l.b16 %v752
    %v1021 = vunpack.c.l.b16 %v753
    %v1022 = vunpack.c.l.b16 %v754
    %v1023 = vunpack.c.l.b16 %v755
    %v1024 = vunpack.c.l.b16 %v756
    %v1025 = vunpack.c.l.b16 %v757
    %v1026 = vunpack.c.l.b16 %v758
    %v1027 = vunpack.c.l.b16 %v759
    %v1028 = vunpack.c.l.b16 %v760
    %v1029 = vunpack.c.l.b16 %v761
    %v1030 = vunpack.c.l.b16 %v762
    %v1031 = vunpack.c.l.b16 %v763
    %v1032 = vunpack.c.l.b16 %v764
    %v1033 = vunpack.c.l.b16 %v765
    %v1034 = vunpack.c.l.b16 %v766
    %v1035 = vunpack.c.l.b16 %v767
    %v1036 = vunpack.c.l.b16 %v768
    %v1037 = vunpack.c.l.b16 %v769
    %v1038 = vunpack.c.l.b16 %v770
    %v1039 = vunpack.c.l.b16 %v771
    %v1040 = vunpack.c.l.b16 %v772
    %v1041 = vunpack.c.l.b16 %v773
    %v1042 = vunpack.c.l.b16 %v774
    %v1043 = vunpack.c.l.b16 %v775
    %v1044 = vunpack.c.l.b16 %v776
    %v1045 = vunpack.c.l.b16 %v777
    %v1046 = vunpack.c.l.b16 %v778
    %v1047 = vunpack.c.l.b16 %v779
    %v1048 = vunpack.c.l.b16 %v780
    %v1049 = vunpack.c.l.b16 %v781
    %v1050 = vunpack.c.l.b16 %v782
    %v1051 = vunpack.c.l.b16 %v783
    %v1052 = vunpack.c.l.b16 %v784
    %v1053 = vunpack.c.l.b16 %v785
    %v1054 = vunpack.c.l.b16 %v786
    %v1055 = vunpack.c.l.b16 %v787
    %v1056 = vunpack.c.l.b16 %v788
    %v1057 = vunpack.c.l.b16 %v789
    %v1058 = vunpack.c.l.b16 %v790
    %v1059 = vunpack.c.l.b16 %v791
    %v1060 = vunpack.c.l.b16 %v792
    %vm1061 = vcmask 1041409
    %v1062 = vsel %vm1061, %v1005, %v997
    %vm1063 = vcmask 1042434
    %v1064 = vsel %vm1063, %v1013, %v1062
    %vm1065 = vcmask 1043459
    %v1066 = vsel %vm1065, %v1021, %v1064
    %vm1067 = vcmask 1044484
    %v1068 = vsel %vm1067, %v1029, %v1066
    %vm1069 = vcmask 1045509
    %v1070 = vsel %vm1069, %v1037, %v1068
    %vm1071 = vcmask 1046534
    %v1072 = vsel %vm1071, %v1045, %v1070
    %vm1073 = vcmask 1047559
    %v1074 = vsel %vm1073, %v1053, %v1072
    %v1075 = vsel %vm1061, %v1006, %v998
    %v1076 = vsel %vm1063, %v1014, %v1075
    %v1077 = vsel %vm1065, %v1022, %v1076
    %v1078 = vsel %vm1067, %v1030, %v1077
    %v1079 = vsel %vm1069, %v1038, %v1078
    %v1080 = vsel %vm1071, %v1046, %v1079
    %v1081 = vsel %vm1073, %v1054, %v1080
    %v1082 = vsel %vm1061, %v1007, %v999
    %v1083 = vsel %vm1063, %v1015, %v1082
    %v1084 = vsel %vm1065, %v1023, %v1083
    %v1085 = vsel %vm1067, %v1031, %v1084
    %v1086 = vsel %vm1069, %v1039, %v1085
    %v1087 = vsel %vm1071, %v1047, %v1086
    %v1088 = vsel %vm1073, %v1055, %v1087
    %v1089 = vsel %vm1061, %v1008, %v1000
    %v1090 = vsel %vm1063, %v1016, %v1089
    %v1091 = vsel %vm1065, %v1024, %v1090
    %v1092 = vsel %vm1067, %v1032, %v1091
    %v1093 = vsel %vm1069, %v1040, %v1092
    %v1094 = vsel %vm1071, %v1048, %v1093
    %v1095 = vsel %vm1073, %v1056, %v1094
    %v1096 = vsel %vm1061, %v1009, %v1001
    %v1097 = vsel %vm1063, %v1017, %v1096
    %v1098 = vsel %vm1065, %v1025, %v1097
    %v1099 = vsel %vm1067, %v1033, %v1098
    %v1100 = vsel %vm1069, %v1041, %v1099
    %v1101 = vsel %vm1071, %v1049, %v1100
    %v1102 = vsel %vm1073, %v1057, %v1101
    %v1103 = vsel %vm1061, %v1010, %v1002
    %v1104 = vsel %vm1063, %v1018, %v1103
    %v1105 = vsel %vm1065, %v1026, %v1104
    %v1106 = vsel %vm1067, %v1034, %v1105
    %v1107 = vsel %vm1069, %v1042, %v1106
    %v1108 = vsel %vm1071, %v1050, %v1107
    %v1109 = vsel %vm1073, %v1058, %v1108
    %v1110 = vsel %vm1061, %v1011, %v1003
    %v1111 = vsel %vm1063, %v1019, %v1110
    %v1112 = vsel %vm1065, %v1027, %v1111
    %v1113 = vsel %vm1067, %v1035, %v1112
    %v1114 = vsel %vm1069, %v1043, %v1113
    %v1115 = vsel %vm1071, %v1051, %v1114
    %v1116 = vsel %vm1073, %v1059, %v1115
    %v1117 = vsel %vm1061, %v1012, %v1004
    %v1118 = vsel %vm1063, %v1020, %v1117
    %v1119 = vsel %vm1065, %v1028, %v1118
    %v1120 = vsel %vm1067, %v1036, %v1119
    %v1121 = vsel %vm1069, %v1044, %v1120
    %v1122 = vsel %vm1071, %v1052, %v1121
    %v1123 = vsel %vm1073, %v1060, %v1122
    %v1124 = vpack.c.b16 %v1074, %v1074
    %v1125 = vpack.c.b16 %v1081, %v1081
    %v1126 = vpack.c.b16 %v1088, %v1088
    %v1127 = vpack.c.b16 %v1095, %v1095
    %v1128 = vpack.c.b16 %v1102, %v1102
    %v1129 = vpack.c.b16 %v1109, %v1109
    %v1130 = vpack.c.b16 %v1116, %v1116
    %v1131 = vpack.c.b16 %v1123, %v1123
    %v1268 = vunpack.c.l.b16 %v793
    %v1269 = vunpack.c.h.b16 %v793
    %v1270 = vunpack.c.l.b16 %v794
    %v1271 = vunpack.c.h.b16 %v794
    %v1272 = vunpack.c.l.b16 %v795
    %v1273 = vunpack.c.h.b16 %v795
    %v1274 = vunpack.c.l.b16 %v796
    %v1275 = vunpack.c.h.b16 %v796
    %v1276 = vunpack.c.l.b16 %v797
    %v1277 = vunpack.c.h.b16 %v797
    %v1278 = vunpack.c.l.b16 %v798
    %v1279 = vunpack.c.h.b16 %v798
    %v1280 = vunpack.c.l.b16 %v799
    %v1281 = vunpack.c.h.b16 %v799
    %v1282 = vunpack.c.l.b16 %v800
    %v1283 = vunpack.c.h.b16 %v800
    %v1284 = vunpack.c.l.b16 %v801
    %v1285 = vunpack.c.h.b16 %v801
    %v1286 = vunpack.c.l.b16 %v802
    %v1287 = vunpack.c.h.b16 %v802
    %v1288 = vunpack.c.l.b16 %v803
    %v1289 = vunpack.c.h.b16 %v803
    %v1290 = vunpack.c.l.b16 %v804
    %v1291 = vunpack.c.h.b16 %v804
    %v1292 = vunpack.c.l.b16 %v805
    %v1293 = vunpack.c.h.b16 %v805
    %v1294 = vunpack.c.l.b16 %v806
    %v1295 = vunpack.c.h.b16 %v806
    %v1296 = vunpack.c.l.b16 %v807
    %v1297 = vunpack.c.h.b16 %v807
    %v1298 = vunpack.c.l.b16 %v808
    %v1299 = vunpack.c.h.b16 %v808
    %v1300 = vunpack.c.l.b16 %v809
    %v1301 = vunpack.c.h.b16 %v809
    %v1302 = vunpack.c.l.b16 %v810
    %v1303 = vunpack.c.h.b16 %v810
    %v1304 = vunpack.c.l.b16 %v811
    %v1305 = vunpack.c.h.b16 %v811
    %v1306 = vunpack.c.l.b16 %v812
    %v1307 = vunpack.c.h.b16 %v812
    %v1308 = vunpack.c.l.b16 %v813
    %v1309 = vunpack.c.h.b16 %v813
    %v1310 = vunpack.c.l.b16 %v814
    %v1311 = vunpack.c.h.b16 %v814
    %v1312 = vunpack.c.l.b16 %v815
    %v1313 = vunpack.c.h.b16 %v815
    %v1314 = vunpack.c.l.b16 %v816
    %v1315 = vunpack.c.h.b16 %v816
    %v1316 = vunpack.c.l.b16 %v817
    %v1317 = vunpack.c.h.b16 %v817
    %v1318 = vunpack.c.l.b16 %v818
    %v1319 = vunpack.c.h.b16 %v818
    %v1320 = vunpack.c.l.b16 %v819
    %v1321 = vunpack.c.h.b16 %v819
    %v1322 = vunpack.c.l.b16 %v820
    %v1323 = vunpack.c.h.b16 %v820
    %v1324 = vunpack.c.l.b16 %v821
    %v1325 = vunpack.c.h.b16 %v821
    %v1326 = vunpack.c.l.b16 %v822
    %v1327 = vunpack.c.h.b16 %v822
    %v1328 = vunpack.c.l.b16 %v823
    %v1329 = vunpack.c.h.b16 %v823
    %v1330 = vunpack.c.l.b16 %v824
    %v1331 = vunpack.c.h.b16 %v824
    %v1332 = vunpack.c.l.b16 %v825
    %v1333 = vunpack.c.h.b16 %v825
    %v1334 = vunpack.c.l.b16 %v826
    %v1335 = vunpack.c.h.b16 %v826
    %v1336 = vunpack.c.l.b16 %v827
    %v1337 = vunpack.c.h.b16 %v827
    %v1338 = vunpack.c.l.b16 %v828
    %v1339 = vunpack.c.h.b16 %v828
    %v1340 = vunpack.c.l.b16 %v829
    %v1341 = vunpack.c.h.b16 %v829
    %v1342 = vunpack.c.l.b16 %v830
    %v1343 = vunpack.c.h.b16 %v830
    %v1344 = vunpack.c.l.b16 %v831
    %v1345 = vunpack.c.h.b16 %v831
    %v1346 = vunpack.c.l.b16 %v832
    %v1347 = vunpack.c.h.b16 %v832
    %v1348 = vunpack.c.l.b16 %v833
    %v1349 = vunpack.c.h.b16 %v833
    %v1350 = vunpack.c.l.b16 %v834
    %v1351 = vunpack.c.h.b16 %v834
    %v1352 = vunpack.c.l.b16 %v835
    %v1353 = vunpack.c.h.b16 %v835
    %v1354 = vunpack.c.l.b16 %v836
    %v1355 = vunpack.c.h.b16 %v836
    %v1356 = vunpack.c.l.b16 %v837
    %v1357 = vunpack.c.h.b16 %v837
    %v1358 = vunpack.c.l.b16 %v838
    %v1359 = vunpack.c.h.b16 %v838
    %v1360 = vunpack.c.l.b16 %v839
    %v1361 = vunpack.c.h.b16 %v839
    %v1362 = vunpack.c.l.b16 %v840
    %v1363 = vunpack.c.h.b16 %v840
    %v1364 = vunpack.c.l.b16 %v841
    %v1365 = vunpack.c.h.b16 %v841
    %v1366 = vunpack.c.l.b16 %v842
    %v1367 = vunpack.c.h.b16 %v842
    %v1368 = vunpack.c.l.b16 %v843
    %v1369 = vunpack.c.h.b16 %v843
    %v1370 = vunpack.c.l.b16 %v844
    %v1371 = vunpack.c.h.b16 %v844
    %v1372 = vunpack.c.l.b16 %v845
    %v1373 = vunpack.c.h.b16 %v845
    %v1374 = vunpack.c.l.b16 %v846
    %v1375 = vunpack.c.h.b16 %v846
    %v1376 = vunpack.c.l.b16 %v847
    %v1377 = vunpack.c.h.b16 %v847
    %v1378 = vunpack.c.l.b16 %v848
    %v1379 = vunpack.c.h.b16 %v848
    %v1380 = vunpack.c.l.b16 %v849
    %v1381 = vunpack.c.h.b16 %v849
    %v1382 = vunpack.c.l.b16 %v850
    %v1383 = vunpack.c.h.b16 %v850
    %v1384 = vunpack.c.l.b16 %v851
    %v1385 = vunpack.c.h.b16 %v851
    %v1386 = vunpack.c.l.b16 %v852
    %v1387 = vunpack.c.h.b16 %v852
    %v1388 = vunpack.c.l.b16 %v853
    %v1389 = vunpack.c.h.b16 %v853
    %v1390 = vunpack.c.l.b16 %v854
    %v1391 = vunpack.c.h.b16 %v854
    %v1392 = vunpack.c.l.b16 %v855
    %v1393 = vunpack.c.h.b16 %v855
    %v1394 = vunpack.c.l.b16 %v856
    %v1395 = vunpack.c.h.b16 %v856
    %v1396 = vunpack.c.l.b16 %v857
    %v1397 = vunpack.c.h.b16 %v857
    %v1398 = vunpack.c.l.b16 %v858
    %v1399 = vunpack.c.h.b16 %v858
    %v1400 = vunpack.c.l.b16 %v859
    %v1401 = vunpack.c.h.b16 %v859
    %v1402 = vunpack.c.l.b16 %v860
    %v1403 = vunpack.c.h.b16 %v860
    %v1404 = vunpack.c.l.b16 %v861
    %v1405 = vunpack.c.h.b16 %v861
    %v1406 = vunpack.c.l.b16 %v862
    %v1407 = vunpack.c.h.b16 %v862
    %v1408 = vunpack.c.l.b16 %v863
    %v1409 = vunpack.c.h.b16 %v863
    %v1410 = vunpack.c.l.b16 %v864
    %v1411 = vunpack.c.h.b16 %v864
    %v1412 = vunpack.c.l.b16 %v865
    %v1413 = vunpack.c.h.b16 %v865
    %v1414 = vunpack.c.l.b16 %v866
    %v1415 = vunpack.c.h.b16 %v866
    %v1416 = vunpack.c.l.b16 %v867
    %v1417 = vunpack.c.h.b16 %v867
    %v1418 = vunpack.c.l.b16 %v868
    %v1419 = vunpack.c.h.b16 %v868
    %v1420 = vunpack.c.l.b16 %v869
    %v1421 = vunpack.c.h.b16 %v869
    %v1422 = vunpack.c.l.b16 %v870
    %v1423 = vunpack.c.h.b16 %v870
    %v1424 = vunpack.c.l.b16 %v871
    %v1425 = vunpack.c.h.b16 %v871
    %v1426 = vunpack.c.l.b16 %v872
    %v1427 = vunpack.c.h.b16 %v872
    %v1428 = vunpack.c.l.b16 %v873
    %v1429 = vunpack.c.h.b16 %v873
    %v1430 = vunpack.c.l.b16 %v874
    %v1431 = vunpack.c.h.b16 %v874
    %v1432 = vunpack.c.l.b16 %v875
    %v1433 = vunpack.c.h.b16 %v875
    %v1434 = vunpack.c.l.b16 %v876
    %v1435 = vunpack.c.h.b16 %v876
    %v1436 = vunpack.c.l.b16 %v877
    %v1437 = vunpack.c.h.b16 %v877
    %v1438 = vunpack.c.l.b16 %v878
    %v1439 = vunpack.c.h.b16 %v878
    %v1440 = vunpack.c.l.b16 %v879
    %v1441 = vunpack.c.h.b16 %v879
    %v1442 = vunpack.c.l.b16 %v880
    %v1443 = vunpack.c.h.b16 %v880
    %v1444 = vunpack.c.l.b16 %v881
    %v1445 = vunpack.c.h.b16 %v881
    %v1446 = vunpack.c.l.b16 %v882
    %v1447 = vunpack.c.h.b16 %v882
    %v1448 = vunpack.c.l.b16 %v883
    %v1449 = vunpack.c.h.b16 %v883
    %v1450 = vunpack.c.l.b16 %v884
    %v1451 = vunpack.c.h.b16 %v884
    %v1452 = vunpack.c.l.b16 %v885
    %v1453 = vunpack.c.h.b16 %v885
    %v1454 = vunpack.c.l.b16 %v886
    %v1455 = vunpack.c.h.b16 %v886
    %v1456 = vunpack.c.l.b16 %v887
    %v1457 = vunpack.c.h.b16 %v887
    %v1458 = vunpack.c.l.b16 %v888
    %v1459 = vunpack.c.h.b16 %v888
    %v1460 = vunpack.c.l.b16 %v889
    %v1461 = vunpack.c.h.b16 %v889
    %v1462 = vunpack.c.l.b16 %v890
    %v1463 = vunpack.c.h.b16 %v890
    %v1464 = vunpack.c.l.b16 %v891
    %v1465 = vunpack.c.h.b16 %v891
    %v1466 = vunpack.c.l.b16 %v892
    %v1467 = vunpack.c.h.b16 %v892
    %v1468 = vunpack.c.l.b16 %v893
    %v1469 = vunpack.c.h.b16 %v893
    %v1470 = vunpack.c.l.b16 %v894
    %v1471 = vunpack.c.h.b16 %v894
    %v1472 = vunpack.c.l.b16 %v895
    %v1473 = vunpack.c.h.b16 %v895
    %v1474 = vunpack.c.l.b16 %v896
    %v1475 = vunpack.c.h.b16 %v896
    %v1476 = vunpack.c.l.b16 %v897
    %v1477 = vunpack.c.h.b16 %v897
    %v1478 = vunpack.c.l.b16 %v898
    %v1479 = vunpack.c.h.b16 %v898
    %v1480 = vunpack.c.l.b16 %v899
    %v1481 = vunpack.c.h.b16 %v899
    %v1482 = vunpack.c.l.b16 %v900
    %v1483 = vunpack.c.h.b16 %v900
    %v1484 = vunpack.c.l.b16 %v901
    %v1485 = vunpack.c.h.b16 %v901
    %v1486 = vunpack.c.l.b16 %v902
    %v1487 = vunpack.c.h.b16 %v902
    %v1488 = vunpack.c.l.b16 %v903
    %v1489 = vunpack.c.h.b16 %v903
    %v1490 = vunpack.c.l.b16 %v904
    %v1491 = vunpack.c.h.b16 %v904
    %v1492 = vunpack.c.l.b16 %v905
    %v1493 = vunpack.c.h.b16 %v905
    %v1494 = vunpack.c.l.b16 %v906
    %v1495 = vunpack.c.h.b16 %v906
    %v1496 = vunpack.c.l.b16 %v907
    %v1497 = vunpack.c.h.b16 %v907
    %v1498 = vunpack.c.l.b16 %v908
    %v1499 = vunpack.c.h.b16 %v908
    %v1500 = vunpack.c.l.b16 %v909
    %v1501 = vunpack.c.h.b16 %v909
    %v1502 = vunpack.c.l.b16 %v910
    %v1503 = vunpack.c.h.b16 %v910
    %v1504 = vunpack.c.l.b16 %v911
    %v1505 = vunpack.c.h.b16 %v911
    %v1506 = vunpack.c.l.b16 %v912
    %v1507 = vunpack.c.h.b16 %v912
    %v1508 = vunpack.c.l.b16 %v913
    %v1509 = vunpack.c.h.b16 %v913
    %v1510 = vunpack.c.l.b16 %v914
    %v1511 = vunpack.c.h.b16 %v914
    %v1512 = vunpack.c.l.b16 %v915
    %v1513 = vunpack.c.h.b16 %v915
    %v1514 = vunpack.c.l.b16 %v916
    %v1515 = vunpack.c.h.b16 %v916
    %v1516 = vunpack.c.l.b16 %v917
    %v1517 = vunpack.c.h.b16 %v917
    %v1518 = vunpack.c.l.b16 %v918
    %v1519 = vunpack.c.h.b16 %v918
    %v1520 = vunpack.c.l.b16 %v919
    %v1521 = vunpack.c.h.b16 %v919
    %v1522 = vunpack.c.l.b16 %v920
    %v1523 = vunpack.c.h.b16 %v920
    %v1524 = vpack.c.b16 %v1270, %v1268
    %v1525 = vpack.c.b16 %v1271, %v1269
    %v1526 = vpack.c.b16 %v1274, %v1272
    %v1527 = vpack.c.b16 %v1275, %v1273
    %v1528 = vpack.c.b16 %v1278, %v1276
    %v1529 = vpack.c.b16 %v1279, %v1277
    %v1530 = vpack.c.b16 %v1282, %v1280
    %v1531 = vpack.c.b16 %v1283, %v1281
    %v1532 = vpack.c.b16 %v1286, %v1284
    %v1533 = vpack.c.b16 %v1287, %v1285
    %v1534 = vpack.c.b16 %v1290, %v1288
    %v1535 = vpack.c.b16 %v1291, %v1289
    %v1536 = vpack.c.b16 %v1294, %v1292
    %v1537 = vpack.c.b16 %v1295, %v1293
    %v1538 = vpack.c.b16 %v1298, %v1296
    %v1539 = vpack.c.b16 %v1299, %v1297
    %v1540 = vpack.c.b16 %v1302, %v1300
    %v1541 = vpack.c.b16 %v1303, %v1301
    %v1542 = vpack.c.b16 %v1306, %v1304
    %v1543 = vpack.c.b16 %v1307, %v1305
    %v1544 = vpack.c.b16 %v1310, %v1308
    %v1545 = vpack.c.b16 %v1311, %v1309
    %v1546 = vpack.c.b16 %v1314, %v1312
    %v1547 = vpack.c.b16 %v1315, %v1313
    %v1548 = vpack.c.b16 %v1318, %v1316
    %v1549 = vpack.c.b16 %v1319, %v1317
    %v1550 = vpack.c.b16 %v1322, %v1320
    %v1551 = vpack.c.b16 %v1323, %v1321
    %v1552 = vpack.c.b16 %v1326, %v1324
    %v1553 = vpack.c.b16 %v1327, %v1325
    %v1554 = vpack.c.b16 %v1330, %v1328
    %v1555 = vpack.c.b16 %v1331, %v1329
    %v1556 = vpack.c.b16 %v1334, %v1332
    %v1557 = vpack.c.b16 %v1335, %v1333
    %v1558 = vpack.c.b16 %v1338, %v1336
    %v1559 = vpack.c.b16 %v1339, %v1337
    %v1560 = vpack.c.b16 %v1342, %v1340
    %v1561 = vpack.c.b16 %v1343, %v1341
    %v1562 = vpack.c.b16 %v1346, %v1344
    %v1563 = vpack.c.b16 %v1347, %v1345
    %v1564 = vpack.c.b16 %v1350, %v1348
    %v1565 = vpack.c.b16 %v1351, %v1349
    %v1566 = vpack.c.b16 %v1354, %v1352
    %v1567 = vpack.c.b16 %v1355, %v1353
    %v1568 = vpack.c.b16 %v1358, %v1356
    %v1569 = vpack.c.b16 %v1359, %v1357
    %v1570 = vpack.c.b16 %v1362, %v1360
    %v1571 = vpack.c.b16 %v1363, %v1361
    %v1572 = vpack.c.b16 %v1366, %v1364
    %v1573 = vpack.c.b16 %v1367, %v1365
    %v1574 = vpack.c.b16 %v1370, %v1368
    %v1575 = vpack.c.b16 %v1371, %v1369
    %v1576 = vpack.c.b16 %v1374, %v1372
    %v1577 = vpack.c.b16 %v1375, %v1373
    %v1578 = vpack.c.b16 %v1378, %v1376
    %v1579 = vpack.c.b16 %v1379, %v1377
    %v1580 = vpack.c.b16 %v1382, %v1380
    %v1581 = vpack.c.b16 %v1383, %v1381
    %v1582 = vpack.c.b16 %v1386, %v1384
    %v1583 = vpack.c.b16 %v1387, %v1385
    %v1584 = vpack.c.b16 %v1390, %v1388
    %v1585 = vpack.c.b16 %v1391, %v1389
    %v1586 = vpack.c.b16 %v1394, %v1392
    %v1587 = vpack.c.b16 %v1395, %v1393
    %v1588 = vpack.c.b16 %v1398, %v1396
    %v1589 = vpack.c.b16 %v1399, %v1397
    %v1590 = vpack.c.b16 %v1402, %v1400
    %v1591 = vpack.c.b16 %v1403, %v1401
    %v1592 = vpack.c.b16 %v1406, %v1404
    %v1593 = vpack.c.b16 %v1407, %v1405
    %v1594 = vpack.c.b16 %v1410, %v1408
    %v1595 = vpack.c.b16 %v1411, %v1409
    %v1596 = vpack.c.b16 %v1414, %v1412
    %v1597 = vpack.c.b16 %v1415, %v1413
    %v1598 = vpack.c.b16 %v1418, %v1416
    %v1599 = vpack.c.b16 %v1419, %v1417
    %v1600 = vpack.c.b16 %v1422, %v1420
    %v1601 = vpack.c.b16 %v1423, %v1421
    %v1602 = vpack.c.b16 %v1426, %v1424
    %v1603 = vpack.c.b16 %v1427, %v1425
    %v1604 = vpack.c.b16 %v1430, %v1428
    %v1605 = vpack.c.b16 %v1431, %v1429
    %v1606 = vpack.c.b16 %v1434, %v1432
    %v1607 = vpack.c.b16 %v1435, %v1433
    %v1608 = vpack.c.b16 %v1438, %v1436
    %v1609 = vpack.c.b16 %v1439, %v1437
    %v1610 = vpack.c.b16 %v1442, %v1440
    %v1611 = vpack.c.b16 %v1443, %v1441
    %v1612 = vpack.c.b16 %v1446, %v1444
    %v1613 = vpack.c.b16 %v1447, %v1445
    %v1614 = vpack.c.b16 %v1450, %v1448
    %v1615 = vpack.c.b16 %v1451, %v1449
    %v1616 = vpack.c.b16 %v1454, %v1452
    %v1617 = vpack.c.b16 %v1455, %v1453
    %v1618 = vpack.c.b16 %v1458, %v1456
    %v1619 = vpack.c.b16 %v1459, %v1457
    %v1620 = vpack.c.b16 %v1462, %v1460
    %v1621 = vpack.c.b16 %v1463, %v1461
    %v1622 = vpack.c.b16 %v1466, %v1464
    %v1623 = vpack.c.b16 %v1467, %v1465
    %v1624 = vpack.c.b16 %v1470, %v1468
    %v1625 = vpack.c.b16 %v1471, %v1469
    %v1626 = vpack.c.b16 %v1474, %v1472
    %v1627 = vpack.c.b16 %v1475, %v1473
    %v1628 = vpack.c.b16 %v1478, %v1476
    %v1629 = vpack.c.b16 %v1479, %v1477
    %v1630 = vpack.c.b16 %v1482, %v1480
    %v1631 = vpack.c.b16 %v1483, %v1481
    %v1632 = vpack.c.b16 %v1486, %v1484
    %v1633 = vpack.c.b16 %v1487, %v1485
    %v1634 = vpack.c.b16 %v1490, %v1488
    %v1635 = vpack.c.b16 %v1491, %v1489
    %v1636 = vpack.c.b16 %v1494, %v1492
    %v1637 = vpack.c.b16 %v1495, %v1493
    %v1638 = vpack.c.b16 %v1498, %v1496
    %v1639 = vpack.c.b16 %v1499, %v1497
    %v1640 = vpack.c.b16 %v1502, %v1500
    %v1641 = vpack.c.b16 %v1503, %v1501
    %v1642 = vpack.c.b16 %v1506, %v1504
    %v1643 = vpack.c.b16 %v1507, %v1505
    %v1644 = vpack.c.b16 %v1510, %v1508
    %v1645 = vpack.c.b16 %v1511, %v1509
    %v1646 = vpack.c.b16 %v1514, %v1512
    %v1647 = vpack.c.b16 %v1515, %v1513
    %v1648 = vpack.c.b16 %v1518, %v1516
    %v1649 = vpack.c.b16 %v1519, %v1517
    %v1650 = vpack.c.b16 %v1522, %v1520
    %v1651 = vpack.c.b16 %v1523, %v1521
    %1780 = vmatprep.subr.bf16.mxu0 %v1539
    %1781 = vmatpush1.bf16.msra.mxu0 %v1538
    %1782 = vmatprep.subr.bf16.mxu0 %v1537
    %1783 = vmatpush1.bf16.msra.mxu0 %v1536
    %1784 = vmatprep.subr.bf16.mxu0 %v1535
    %1785 = vmatpush1.bf16.msra.mxu0 %v1534
    %1786 = vmatprep.subr.bf16.mxu0 %v1533
    %1787 = vmatpush1.bf16.msra.mxu0 %v1532
    %1788 = vmatprep.subr.bf16.mxu0 %v1531
    %1789 = vmatpush1.bf16.msra.mxu0 %v1530
    %1790 = vmatprep.subr.bf16.mxu0 %v1529
    %1791 = vmatpush1.bf16.msra.mxu0 %v1528
    %1792 = vmatprep.subr.bf16.mxu0 %v1527
    %1793 = vmatpush1.bf16.msra.mxu0 %v1526
    %1794 = vmatprep.subr.bf16.mxu0 %v1525
    %1795 = vmatpush1.bf16.msra.mxu0 %v1524
    %1796 = vmatprep.subr.bf16.mxu0 %v1555
    %1797 = vmatpush2.bf16.msra.mxu0 %v1554
    %1798 = vmatprep.subr.bf16.mxu0 %v1553
    %1799 = vmatpush2.bf16.msra.mxu0 %v1552
    %1800 = vmatprep.subr.bf16.mxu0 %v1551
    %1801 = vmatpush2.bf16.msra.mxu0 %v1550
    %1802 = vmatprep.subr.bf16.mxu0 %v1549
    %1803 = vmatpush2.bf16.msra.mxu0 %v1548
    %1804 = vmatprep.subr.bf16.mxu0 %v1547
    %1805 = vmatpush2.bf16.msra.mxu0 %v1546
    %1806 = vmatprep.subr.bf16.mxu0 %v1545
    %1807 = vmatpush2.bf16.msra.mxu0 %v1544
    %1808 = vmatprep.subr.bf16.mxu0 %v1543
    %1809 = vmatpush2.bf16.msra.mxu0 %v1542
    %1810 = vmatprep.subr.bf16.mxu0 %v1541
    %1811 = vmatpush2.bf16.msra.mxu0 %v1540
    %1812 = vmatprep.mubr.bf16.mxu0 %v1125
    %1813 = vmatmul.mubr.bf16.gmra.mxu0 %v1124
    %v1814 = vpop.f32.mrf.mxu0
    %v1815 = vadd.f32 %v926, %v1814
    %v1816 = vpop.f32.mrf.mxu0
    %v1817 = vadd.f32 %v930, %v1816
    %v1818 = vpop.f32.mrf.mxu0
    %v1819 = vpop.f32.mrf.mxu0
    %1820 = vdwg.mxu0
    %1821 = vmatprep.subr.bf16.mxu0 %v1571
    %1822 = vmatpush1.bf16.msra.mxu0 %v1570
    %1823 = vmatprep.subr.bf16.mxu0 %v1569
    %1824 = vmatpush1.bf16.msra.mxu0 %v1568
    %1825 = vmatprep.subr.bf16.mxu0 %v1567
    %1826 = vmatpush1.bf16.msra.mxu0 %v1566
    %1827 = vmatprep.subr.bf16.mxu0 %v1565
    %1828 = vmatpush1.bf16.msra.mxu0 %v1564
    %1829 = vmatprep.subr.bf16.mxu0 %v1563
    %1830 = vmatpush1.bf16.msra.mxu0 %v1562
    %1831 = vmatprep.subr.bf16.mxu0 %v1561
    %1832 = vmatpush1.bf16.msra.mxu0 %v1560
    %1833 = vmatprep.subr.bf16.mxu0 %v1559
    %1834 = vmatpush1.bf16.msra.mxu0 %v1558
    %1835 = vmatprep.subr.bf16.mxu0 %v1557
    %1836 = vmatpush1.bf16.msra.mxu0 %v1556
    %1837 = vmatprep.subr.bf16.mxu0 %v1587
    %1838 = vmatpush2.bf16.msra.mxu0 %v1586
    %1839 = vmatprep.subr.bf16.mxu0 %v1585
    %1840 = vmatpush2.bf16.msra.mxu0 %v1584
    %1841 = vmatprep.subr.bf16.mxu0 %v1583
    %1842 = vmatpush2.bf16.msra.mxu0 %v1582
    %1843 = vmatprep.subr.bf16.mxu0 %v1581
    %1844 = vmatpush2.bf16.msra.mxu0 %v1580
    %1845 = vmatprep.subr.bf16.mxu0 %v1579
    %1846 = vmatpush2.bf16.msra.mxu0 %v1578
    %1847 = vmatprep.subr.bf16.mxu0 %v1577
    %1848 = vmatpush2.bf16.msra.mxu0 %v1576
    %1849 = vmatprep.subr.bf16.mxu0 %v1575
    %1850 = vmatpush2.bf16.msra.mxu0 %v1574
    %1851 = vmatprep.subr.bf16.mxu0 %v1573
    %1852 = vmatpush2.bf16.msra.mxu0 %v1572
    %1853 = vmatprep.mubr.bf16.mxu0 %v1127
    %1854 = vmatmul.mubr.bf16.gmra.mxu0 %v1126
    %v1855 = vpop.f32.mrf.mxu0
    %v1856 = vadd.f32 %v1815, %v1855
    %v1857 = vpop.f32.mrf.mxu0
    %v1858 = vadd.f32 %v1817, %v1857
    %v1859 = vpop.f32.mrf.mxu0
    %v1860 = vpop.f32.mrf.mxu0
    %1861 = vdwg.mxu0
    %1862 = vmatprep.subr.bf16.mxu0 %v1603
    %1863 = vmatpush1.bf16.msra.mxu0 %v1602
    %1864 = vmatprep.subr.bf16.mxu0 %v1601
    %1865 = vmatpush1.bf16.msra.mxu0 %v1600
    %1866 = vmatprep.subr.bf16.mxu0 %v1599
    %1867 = vmatpush1.bf16.msra.mxu0 %v1598
    %1868 = vmatprep.subr.bf16.mxu0 %v1597
    %1869 = vmatpush1.bf16.msra.mxu0 %v1596
    %1870 = vmatprep.subr.bf16.mxu0 %v1595
    %1871 = vmatpush1.bf16.msra.mxu0 %v1594
    %1872 = vmatprep.subr.bf16.mxu0 %v1593
    %1873 = vmatpush1.bf16.msra.mxu0 %v1592
    %1874 = vmatprep.subr.bf16.mxu0 %v1591
    %1875 = vmatpush1.bf16.msra.mxu0 %v1590
    %1876 = vmatprep.subr.bf16.mxu0 %v1589
    %1877 = vmatpush1.bf16.msra.mxu0 %v1588
    %1878 = vmatprep.subr.bf16.mxu0 %v1619
    %1879 = vmatpush2.bf16.msra.mxu0 %v1618
    %1880 = vmatprep.subr.bf16.mxu0 %v1617
    %1881 = vmatpush2.bf16.msra.mxu0 %v1616
    %1882 = vmatprep.subr.bf16.mxu0 %v1615
    %1883 = vmatpush2.bf16.msra.mxu0 %v1614
    %1884 = vmatprep.subr.bf16.mxu0 %v1613
    %1885 = vmatpush2.bf16.msra.mxu0 %v1612
    %1886 = vmatprep.subr.bf16.mxu0 %v1611
    %1887 = vmatpush2.bf16.msra.mxu0 %v1610
    %1888 = vmatprep.subr.bf16.mxu0 %v1609
    %1889 = vmatpush2.bf16.msra.mxu0 %v1608
    %1890 = vmatprep.subr.bf16.mxu0 %v1607
    %1891 = vmatpush2.bf16.msra.mxu0 %v1606
    %1892 = vmatprep.subr.bf16.mxu0 %v1605
    %1893 = vmatpush2.bf16.msra.mxu0 %v1604
    %1894 = vmatprep.mubr.bf16.mxu0 %v1129
    %1895 = vmatmul.mubr.bf16.gmra.mxu0 %v1128
    %v1896 = vpop.f32.mrf.mxu0
    %v1897 = vadd.f32 %v1856, %v1896
    %v1898 = vpop.f32.mrf.mxu0
    %v1899 = vadd.f32 %v1858, %v1898
    %v1900 = vpop.f32.mrf.mxu0
    %v1901 = vpop.f32.mrf.mxu0
    %1902 = vdwg.mxu0
    %1903 = vmatprep.subr.bf16.mxu0 %v1635
    %1904 = vmatpush1.bf16.msra.mxu0 %v1634
    %1905 = vmatprep.subr.bf16.mxu0 %v1633
    %1906 = vmatpush1.bf16.msra.mxu0 %v1632
    %1907 = vmatprep.subr.bf16.mxu0 %v1631
    %1908 = vmatpush1.bf16.msra.mxu0 %v1630
    %1909 = vmatprep.subr.bf16.mxu0 %v1629
    %1910 = vmatpush1.bf16.msra.mxu0 %v1628
    %1911 = vmatprep.subr.bf16.mxu0 %v1627
    %1912 = vmatpush1.bf16.msra.mxu0 %v1626
    %1913 = vmatprep.subr.bf16.mxu0 %v1625
    %1914 = vmatpush1.bf16.msra.mxu0 %v1624
    %1915 = vmatprep.subr.bf16.mxu0 %v1623
    %1916 = vmatpush1.bf16.msra.mxu0 %v1622
    %1917 = vmatprep.subr.bf16.mxu0 %v1621
    %1918 = vmatpush1.bf16.msra.mxu0 %v1620
    %1919 = vmatprep.subr.bf16.mxu0 %v1651
    %1920 = vmatpush2.bf16.msra.mxu0 %v1650
    %1921 = vmatprep.subr.bf16.mxu0 %v1649
    %1922 = vmatpush2.bf16.msra.mxu0 %v1648
    %1923 = vmatprep.subr.bf16.mxu0 %v1647
    %1924 = vmatpush2.bf16.msra.mxu0 %v1646
    %1925 = vmatprep.subr.bf16.mxu0 %v1645
    %1926 = vmatpush2.bf16.msra.mxu0 %v1644
    %1927 = vmatprep.subr.bf16.mxu0 %v1643
    %1928 = vmatpush2.bf16.msra.mxu0 %v1642
    %1929 = vmatprep.subr.bf16.mxu0 %v1641
    %1930 = vmatpush2.bf16.msra.mxu0 %v1640
    %1931 = vmatprep.subr.bf16.mxu0 %v1639
    %1932 = vmatpush2.bf16.msra.mxu0 %v1638
    %1933 = vmatprep.subr.bf16.mxu0 %v1637
    %1934 = vmatpush2.bf16.msra.mxu0 %v1636
    %1935 = vmatprep.mubr.bf16.mxu0 %v1131
    %1936 = vmatmul.mubr.bf16.gmra.mxu0 %v1130
    %v1937 = vpop.f32.mrf.mxu0
    %v1938 = vadd.f32 %v1897, %v1937
    %v1939 = vpop.f32.mrf.mxu0
    %v1940 = vadd.f32 %v1899, %v1939
    %v1941 = vpop.f32.mrf.mxu0
    %v1942 = vpop.f32.mrf.mxu0
    %1943 = vdwg.mxu0
    %v1944 = vmax.f32 %v1938, 0.0
    %v1945 = vmax.f32 %v1940, 0.0
    %v1946 = vpack.c.bf16 %v1944, %v1944
    %v1947 = vpack.c.bf16 %v1945, %v1945
    %v1948 = vld [vmem:[#allocation6] sm:$0xff]
    %v1949 = vld [vmem:[#allocation6 + $0x8] sm:$0xff]
    %v1950 = vld [vmem:[#allocation6 + $0x10] sm:$0xff]
    %v1951 = vld [vmem:[#allocation6 + $0x18] sm:$0xff]
    %v1952 = vld [vmem:[#allocation6 + $0x20] sm:$0xff]
    %v1953 = vld [vmem:[#allocation6 + $0x28] sm:$0xff]
    %v1954 = vld [vmem:[#allocation6 + $0x30] sm:$0xff]
    %v1955 = vld [vmem:[#allocation6 + $0x38] sm:$0xff]
    %v1956 = vld [vmem:[#allocation6 + $0x40] sm:$0xff]
    %v1957 = vld [vmem:[#allocation6 + $0x48] sm:$0xff]
    %v1958 = vld [vmem:[#allocation6 + $0x50] sm:$0xff]
    %v1959 = vld [vmem:[#allocation6 + $0x58] sm:$0xff]
    %v1960 = vld [vmem:[#allocation6 + $0x60] sm:$0xff]
    %v1961 = vld [vmem:[#allocation6 + $0x68] sm:$0xff]
    %v1962 = vld [vmem:[#allocation6 + $0x70] sm:$0xff]
    %v1963 = vld [vmem:[#allocation6 + $0x78] sm:$0xff]
    %v1964 = vld [vmem:[#allocation6 + $0x80] sm:$0xff]
    %v1965 = vld [vmem:[#allocation6 + $0x88] sm:$0xff]
    %v1966 = vld [vmem:[#allocation6 + $0x90] sm:$0xff]
    %v1967 = vld [vmem:[#allocation6 + $0x98] sm:$0xff]
    %v1968 = vld [vmem:[#allocation6 + $0xa0] sm:$0xff]
    %v1969 = vld [vmem:[#allocation6 + $0xa8] sm:$0xff]
    %v1970 = vld [vmem:[#allocation6 + $0xb0] sm:$0xff]
    %v1971 = vld [vmem:[#allocation6 + $0xb8] sm:$0xff]
    %v1972 = vld [vmem:[#allocation6 + $0xc0] sm:$0xff]
    %v1973 = vld [vmem:[#allocation6 + $0xc8] sm:$0xff]
    %v1974 = vld [vmem:[#allocation6 + $0xd0] sm:$0xff]
    %v1975 = vld [vmem:[#allocation6 + $0xd8] sm:$0xff]
    %v1976 = vld [vmem:[#allocation6 + $0xe0] sm:$0xff]
    %v1977 = vld [vmem:[#allocation6 + $0xe8] sm:$0xff]
    %v1978 = vld [vmem:[#allocation6 + $0xf0] sm:$0xff]
    %v1979 = vld [vmem:[#allocation6 + $0xf8] sm:$0xff]
    %v1980 = vld [vmem:[%s4] sm:$0x3]
    %v1982 = vlaneseq
    %v1983 = vshrl.u32 %v1982, 7
    %v1984 = vsub.s32 0, %v1983
    %v1985 = vrot.slane %v1980, %v1984
    %v1986 = vlaneseq
    %v1987 = vshrl.u32 %v1986, 7
    %v1988 = vsub.s32 1, %v1987
    %v1989 = vrot.slane %v1980, %v1988
    %v2024 = vunpack.c.l.b16 %v1948
    %v2025 = vunpack.c.h.b16 %v1948
    %v2026 = vunpack.c.l.b16 %v1949
    %v2027 = vunpack.c.h.b16 %v1949
    %v2028 = vunpack.c.l.b16 %v1950
    %v2029 = vunpack.c.h.b16 %v1950
    %v2030 = vunpack.c.l.b16 %v1951
    %v2031 = vunpack.c.h.b16 %v1951
    %v2032 = vunpack.c.l.b16 %v1952
    %v2033 = vunpack.c.h.b16 %v1952
    %v2034 = vunpack.c.l.b16 %v1953
    %v2035 = vunpack.c.h.b16 %v1953
    %v2036 = vunpack.c.l.b16 %v1954
    %v2037 = vunpack.c.h.b16 %v1954
    %v2038 = vunpack.c.l.b16 %v1955
    %v2039 = vunpack.c.h.b16 %v1955
    %v2040 = vunpack.c.l.b16 %v1956
    %v2041 = vunpack.c.h.b16 %v1956
    %v2042 = vunpack.c.l.b16 %v1957
    %v2043 = vunpack.c.h.b16 %v1957
    %v2044 = vunpack.c.l.b16 %v1958
    %v2045 = vunpack.c.h.b16 %v1958
    %v2046 = vunpack.c.l.b16 %v1959
    %v2047 = vunpack.c.h.b16 %v1959
    %v2048 = vunpack.c.l.b16 %v1960
    %v2049 = vunpack.c.h.b16 %v1960
    %v2050 = vunpack.c.l.b16 %v1961
    %v2051 = vunpack.c.h.b16 %v1961
    %v2052 = vunpack.c.l.b16 %v1962
    %v2053 = vunpack.c.h.b16 %v1962
    %v2054 = vunpack.c.l.b16 %v1963
    %v2055 = vunpack.c.h.b16 %v1963
    %v2056 = vunpack.c.l.b16 %v1964
    %v2057 = vunpack.c.h.b16 %v1964
    %v2058 = vunpack.c.l.b16 %v1965
    %v2059 = vunpack.c.h.b16 %v1965
    %v2060 = vunpack.c.l.b16 %v1966
    %v2061 = vunpack.c.h.b16 %v1966
    %v2062 = vunpack.c.l.b16 %v1967
    %v2063 = vunpack.c.h.b16 %v1967
    %v2064 = vunpack.c.l.b16 %v1968
    %v2065 = vunpack.c.h.b16 %v1968
    %v2066 = vunpack.c.l.b16 %v1969
    %v2067 = vunpack.c.h.b16 %v1969
    %v2068 = vunpack.c.l.b16 %v1970
    %v2069 = vunpack.c.h.b16 %v1970
    %v2070 = vunpack.c.l.b16 %v1971
    %v2071 = vunpack.c.h.b16 %v1971
    %v2072 = vunpack.c.l.b16 %v1972
    %v2073 = vunpack.c.h.b16 %v1972
    %v2074 = vunpack.c.l.b16 %v1973
    %v2075 = vunpack.c.h.b16 %v1973
    %v2076 = vunpack.c.l.b16 %v1974
    %v2077 = vunpack.c.h.b16 %v1974
    %v2078 = vunpack.c.l.b16 %v1975
    %v2079 = vunpack.c.h.b16 %v1975
    %v2080 = vunpack.c.l.b16 %v1976
    %v2081 = vunpack.c.h.b16 %v1976
    %v2082 = vunpack.c.l.b16 %v1977
    %v2083 = vunpack.c.h.b16 %v1977
    %v2084 = vunpack.c.l.b16 %v1978
    %v2085 = vunpack.c.h.b16 %v1978
    %v2086 = vunpack.c.l.b16 %v1979
    %v2087 = vunpack.c.h.b16 %v1979
    %v2088 = vpack.c.b16 %v2026, %v2024
    %v2089 = vpack.c.b16 %v2027, %v2025
    %v2090 = vpack.c.b16 %v2030, %v2028
    %v2091 = vpack.c.b16 %v2031, %v2029
    %v2092 = vpack.c.b16 %v2034, %v2032
    %v2093 = vpack.c.b16 %v2035, %v2033
    %v2094 = vpack.c.b16 %v2038, %v2036
    %v2095 = vpack.c.b16 %v2039, %v2037
    %v2096 = vpack.c.b16 %v2042, %v2040
    %v2097 = vpack.c.b16 %v2043, %v2041
    %v2098 = vpack.c.b16 %v2046, %v2044
    %v2099 = vpack.c.b16 %v2047, %v2045
    %v2100 = vpack.c.b16 %v2050, %v2048
    %v2101 = vpack.c.b16 %v2051, %v2049
    %v2102 = vpack.c.b16 %v2054, %v2052
    %v2103 = vpack.c.b16 %v2055, %v2053
    %v2104 = vpack.c.b16 %v2058, %v2056
    %v2105 = vpack.c.b16 %v2059, %v2057
    %v2106 = vpack.c.b16 %v2062, %v2060
    %v2107 = vpack.c.b16 %v2063, %v2061
    %v2108 = vpack.c.b16 %v2066, %v2064
    %v2109 = vpack.c.b16 %v2067, %v2065
    %v2110 = vpack.c.b16 %v2070, %v2068
    %v2111 = vpack.c.b16 %v2071, %v2069
    %v2112 = vpack.c.b16 %v2074, %v2072
    %v2113 = vpack.c.b16 %v2075, %v2073
    %v2114 = vpack.c.b16 %v2078, %v2076
    %v2115 = vpack.c.b16 %v2079, %v2077
    %v2116 = vpack.c.b16 %v2082, %v2080
    %v2117 = vpack.c.b16 %v2083, %v2081
    %v2118 = vpack.c.b16 %v2086, %v2084
    %v2119 = vpack.c.b16 %v2087, %v2085
    %2152 = vmatprep.subr.bf16.mxu0 %v2103
    %2153 = vmatpush1.bf16.msra.mxu0 %v2102
    %2154 = vmatprep.subr.bf16.mxu0 %v2101
    %2155 = vmatpush1.bf16.msra.mxu0 %v2100
    %2156 = vmatprep.subr.bf16.mxu0 %v2099
    %2157 = vmatpush1.bf16.msra.mxu0 %v2098
    %2158 = vmatprep.subr.bf16.mxu0 %v2097
    %2159 = vmatpush1.bf16.msra.mxu0 %v2096
    %2160 = vmatprep.subr.bf16.mxu0 %v2095
    %2161 = vmatpush1.bf16.msra.mxu0 %v2094
    %2162 = vmatprep.subr.bf16.mxu0 %v2093
    %2163 = vmatpush1.bf16.msra.mxu0 %v2092
    %2164 = vmatprep.subr.bf16.mxu0 %v2091
    %2165 = vmatpush1.bf16.msra.mxu0 %v2090
    %2166 = vmatprep.subr.bf16.mxu0 %v2089
    %2167 = vmatpush1.bf16.msra.mxu0 %v2088
    %2168 = vmatprep.subr.bf16.mxu0 %v2119
    %2169 = vmatpush2.bf16.msra.mxu0 %v2118
    %2170 = vmatprep.subr.bf16.mxu0 %v2117
    %2171 = vmatpush2.bf16.msra.mxu0 %v2116
    %2172 = vmatprep.subr.bf16.mxu0 %v2115
    %2173 = vmatpush2.bf16.msra.mxu0 %v2114
    %2174 = vmatprep.subr.bf16.mxu0 %v2113
    %2175 = vmatpush2.bf16.msra.mxu0 %v2112
    %2176 = vmatprep.subr.bf16.mxu0 %v2111
    %2177 = vmatpush2.bf16.msra.mxu0 %v2110
    %2178 = vmatprep.subr.bf16.mxu0 %v2109
    %2179 = vmatpush2.bf16.msra.mxu0 %v2108
    %2180 = vmatprep.subr.bf16.mxu0 %v2107
    %2181 = vmatpush2.bf16.msra.mxu0 %v2106
    %2182 = vmatprep.subr.bf16.mxu0 %v2105
    %2183 = vmatpush2.bf16.msra.mxu0 %v2104
    %2184 = vmatprep.mubr.bf16.mxu0 %v1947
    %2185 = vmatmul.mubr.bf16.gmra.mxu0 %v1946
    %v2186 = vpop.f32.mrf.mxu0
    %v2187 = vadd.f32 %v1985, %v2186
    %v2188 = vpop.f32.mrf.mxu0
    %v2189 = vadd.f32 %v1989, %v2188
    %v2190 = vpop.f32.mrf.mxu0
    %v2191 = vpop.f32.mrf.mxu0
    %2192 = vdwg.mxu0
    %v2193 = vmax.f32 %v2187, 0.0
    %v2194 = vmax.f32 %v2189, 0.0
    %v2195 = vpack.c.bf16 %v2193, %v2193
    %v2196 = vpack.c.bf16 %v2194, %v2194
    %v2197 = vld [vmem:[#allocation7] sm:$0xff]
    %v2198 = vld [vmem:[#allocation7 + $0x8] sm:$0xff]
    %v2199 = vld [vmem:[#allocation7 + $0x10] sm:$0xff]
    %v2200 = vld [vmem:[#allocation7 + $0x18] sm:$0xff]
    %v2201 = vld [vmem:[#allocation7 + $0x20] sm:$0xff]
    %v2202 = vld [vmem:[#allocation7 + $0x28] sm:$0xff]
    %v2203 = vld [vmem:[#allocation7 + $0x30] sm:$0xff]
    %v2204 = vld [vmem:[#allocation7 + $0x38] sm:$0xff]
    %v2205 = vld [vmem:[#allocation7 + $0x40] sm:$0xff]
    %v2206 = vld [vmem:[#allocation7 + $0x48] sm:$0xff]
    %v2207 = vld [vmem:[#allocation7 + $0x50] sm:$0xff]
    %v2208 = vld [vmem:[#allocation7 + $0x58] sm:$0xff]
    %v2209 = vld [vmem:[#allocation7 + $0x60] sm:$0xff]
    %v2210 = vld [vmem:[#allocation7 + $0x68] sm:$0xff]
    %v2211 = vld [vmem:[#allocation7 + $0x70] sm:$0xff]
    %v2212 = vld [vmem:[#allocation7 + $0x78] sm:$0xff]
    %v2213 = vld [vmem:[#allocation7 + $0x80] sm:$0xff]
    %v2214 = vld [vmem:[#allocation7 + $0x88] sm:$0xff]
    %v2215 = vld [vmem:[#allocation7 + $0x90] sm:$0xff]
    %v2216 = vld [vmem:[#allocation7 + $0x98] sm:$0xff]
    %v2217 = vld [vmem:[#allocation7 + $0xa0] sm:$0xff]
    %v2218 = vld [vmem:[#allocation7 + $0xa8] sm:$0xff]
    %v2219 = vld [vmem:[#allocation7 + $0xb0] sm:$0xff]
    %v2220 = vld [vmem:[#allocation7 + $0xb8] sm:$0xff]
    %v2221 = vld [vmem:[#allocation7 + $0xc0] sm:$0xff]
    %v2222 = vld [vmem:[#allocation7 + $0xc8] sm:$0xff]
    %v2223 = vld [vmem:[#allocation7 + $0xd0] sm:$0xff]
    %v2224 = vld [vmem:[#allocation7 + $0xd8] sm:$0xff]
    %v2225 = vld [vmem:[#allocation7 + $0xe0] sm:$0xff]
    %v2226 = vld [vmem:[#allocation7 + $0xe8] sm:$0xff]
    %v2227 = vld [vmem:[#allocation7 + $0xf0] sm:$0xff]
    %v2228 = vld [vmem:[#allocation7 + $0xf8] sm:$0xff]
    %v2229 = vld [vmem:[%s6] sm:$0x3]
    %v2231 = vlaneseq
    %v2232 = vshrl.u32 %v2231, 7
    %v2233 = vsub.s32 0, %v2232
    %v2234 = vrot.slane %v2229, %v2233
    %v2235 = vlaneseq
    %v2236 = vshrl.u32 %v2235, 7
    %v2237 = vsub.s32 1, %v2236
    %v2238 = vrot.slane %v2229, %v2237
    %v2273 = vunpack.c.l.b16 %v2197
    %v2274 = vunpack.c.h.b16 %v2197
    %v2275 = vunpack.c.l.b16 %v2198
    %v2276 = vunpack.c.h.b16 %v2198
    %v2277 = vunpack.c.l.b16 %v2199
    %v2278 = vunpack.c.h.b16 %v2199
    %v2279 = vunpack.c.l.b16 %v2200
    %v2280 = vunpack.c.h.b16 %v2200
    %v2281 = vunpack.c.l.b16 %v2201
    %v2282 = vunpack.c.h.b16 %v2201
    %v2283 = vunpack.c.l.b16 %v2202
    %v2284 = vunpack.c.h.b16 %v2202
    %v2285 = vunpack.c.l.b16 %v2203
    %v2286 = vunpack.c.h.b16 %v2203
    %v2287 = vunpack.c.l.b16 %v2204
    %v2288 = vunpack.c.h.b16 %v2204
    %v2289 = vunpack.c.l.b16 %v2205
    %v2290 = vunpack.c.h.b16 %v2205
    %v2291 = vunpack.c.l.b16 %v2206
    %v2292 = vunpack.c.h.b16 %v2206
    %v2293 = vunpack.c.l.b16 %v2207
    %v2294 = vunpack.c.h.b16 %v2207
    %v2295 = vunpack.c.l.b16 %v2208
    %v2296 = vunpack.c.h.b16 %v2208
    %v2297 = vunpack.c.l.b16 %v2209
    %v2298 = vunpack.c.h.b16 %v2209
    %v2299 = vunpack.c.l.b16 %v2210
    %v2300 = vunpack.c.h.b16 %v2210
    %v2301 = vunpack.c.l.b16 %v2211
    %v2302 = vunpack.c.h.b16 %v2211
    %v2303 = vunpack.c.l.b16 %v2212
    %v2304 = vunpack.c.h.b16 %v2212
    %v2305 = vunpack.c.l.b16 %v2213
    %v2306 = vunpack.c.h.b16 %v2213
    %v2307 = vunpack.c.l.b16 %v2214
    %v2308 = vunpack.c.h.b16 %v2214
    %v2309 = vunpack.c.l.b16 %v2215
    %v2310 = vunpack.c.h.b16 %v2215
    %v2311 = vunpack.c.l.b16 %v2216
    %v2312 = vunpack.c.h.b16 %v2216
    %v2313 = vunpack.c.l.b16 %v2217
    %v2314 = vunpack.c.h.b16 %v2217
    %v2315 = vunpack.c.l.b16 %v2218
    %v2316 = vunpack.c.h.b16 %v2218
    %v2317 = vunpack.c.l.b16 %v2219
    %v2318 = vunpack.c.h.b16 %v2219
    %v2319 = vunpack.c.l.b16 %v2220
    %v2320 = vunpack.c.h.b16 %v2220
    %v2321 = vunpack.c.l.b16 %v2221
    %v2322 = vunpack.c.h.b16 %v2221
    %v2323 = vunpack.c.l.b16 %v2222
    %v2324 = vunpack.c.h.b16 %v2222
    %v2325 = vunpack.c.l.b16 %v2223
    %v2326 = vunpack.c.h.b16 %v2223
    %v2327 = vunpack.c.l.b16 %v2224
    %v2328 = vunpack.c.h.b16 %v2224
    %v2329 = vunpack.c.l.b16 %v2225
    %v2330 = vunpack.c.h.b16 %v2225
    %v2331 = vunpack.c.l.b16 %v2226
    %v2332 = vunpack.c.h.b16 %v2226
    %v2333 = vunpack.c.l.b16 %v2227
    %v2334 = vunpack.c.h.b16 %v2227
    %v2335 = vunpack.c.l.b16 %v2228
    %v2336 = vunpack.c.h.b16 %v2228
    %v2337 = vpack.c.b16 %v2275, %v2273
    %v2338 = vpack.c.b16 %v2276, %v2274
    %v2339 = vpack.c.b16 %v2279, %v2277
    %v2340 = vpack.c.b16 %v2280, %v2278
    %v2341 = vpack.c.b16 %v2283, %v2281
    %v2342 = vpack.c.b16 %v2284, %v2282
    %v2343 = vpack.c.b16 %v2287, %v2285
    %v2344 = vpack.c.b16 %v2288, %v2286
    %v2345 = vpack.c.b16 %v2291, %v2289
    %v2346 = vpack.c.b16 %v2292, %v2290
    %v2347 = vpack.c.b16 %v2295, %v2293
    %v2348 = vpack.c.b16 %v2296, %v2294
    %v2349 = vpack.c.b16 %v2299, %v2297
    %v2350 = vpack.c.b16 %v2300, %v2298
    %v2351 = vpack.c.b16 %v2303, %v2301
    %v2352 = vpack.c.b16 %v2304, %v2302
    %v2353 = vpack.c.b16 %v2307, %v2305
    %v2354 = vpack.c.b16 %v2308, %v2306
    %v2355 = vpack.c.b16 %v2311, %v2309
    %v2356 = vpack.c.b16 %v2312, %v2310
    %v2357 = vpack.c.b16 %v2315, %v2313
    %v2358 = vpack.c.b16 %v2316, %v2314
    %v2359 = vpack.c.b16 %v2319, %v2317
    %v2360 = vpack.c.b16 %v2320, %v2318
    %v2361 = vpack.c.b16 %v2323, %v2321
    %v2362 = vpack.c.b16 %v2324, %v2322
    %v2363 = vpack.c.b16 %v2327, %v2325
    %v2364 = vpack.c.b16 %v2328, %v2326
    %v2365 = vpack.c.b16 %v2331, %v2329
    %v2366 = vpack.c.b16 %v2332, %v2330
    %v2367 = vpack.c.b16 %v2335, %v2333
    %v2368 = vpack.c.b16 %v2336, %v2334
    %2401 = vmatprep.subr.bf16.mxu0 %v2352
    %2402 = vmatpush1.bf16.msra.mxu0 %v2351
    %2403 = vmatprep.subr.bf16.mxu0 %v2350
    %2404 = vmatpush1.bf16.msra.mxu0 %v2349
    %2405 = vmatprep.subr.bf16.mxu0 %v2348
    %2406 = vmatpush1.bf16.msra.mxu0 %v2347
    %2407 = vmatprep.subr.bf16.mxu0 %v2346
    %2408 = vmatpush1.bf16.msra.mxu0 %v2345
    %2409 = vmatprep.subr.bf16.mxu0 %v2344
    %2410 = vmatpush1.bf16.msra.mxu0 %v2343
    %2411 = vmatprep.subr.bf16.mxu0 %v2342
    %2412 = vmatpush1.bf16.msra.mxu0 %v2341
    %2413 = vmatprep.subr.bf16.mxu0 %v2340
    %2414 = vmatpush1.bf16.msra.mxu0 %v2339
    %2415 = vmatprep.subr.bf16.mxu0 %v2338
    %2416 = vmatpush1.bf16.msra.mxu0 %v2337
    %2417 = vmatprep.subr.bf16.mxu0 %v2368
    %2418 = vmatpush2.bf16.msra.mxu0 %v2367
    %2419 = vmatprep.subr.bf16.mxu0 %v2366
    %2420 = vmatpush2.bf16.msra.mxu0 %v2365
    %2421 = vmatprep.subr.bf16.mxu0 %v2364
    %2422 = vmatpush2.bf16.msra.mxu0 %v2363
    %2423 = vmatprep.subr.bf16.mxu0 %v2362
    %2424 = vmatpush2.bf16.msra.mxu0 %v2361
    %2425 = vmatprep.subr.bf16.mxu0 %v2360
    %2426 = vmatpush2.bf16.msra.mxu0 %v2359
    %2427 = vmatprep.subr.bf16.mxu0 %v2358
    %2428 = vmatpush2.bf16.msra.mxu0 %v2357
    %2429 = vmatprep.subr.bf16.mxu0 %v2356
    %2430 = vmatpush2.bf16.msra.mxu0 %v2355
    %2431 = vmatprep.subr.bf16.mxu0 %v2354
    %2432 = vmatpush2.bf16.msra.mxu0 %v2353
    %2433 = vmatprep.mubr.bf16.mxu0 %v2196
    %2434 = vmatmul.mubr.bf16.gmra.mxu0 %v2195
    %v2435 = vpop.f32.mrf.mxu0
    %v2436 = vadd.f32 %v2234, %v2435
    %v2437 = vpop.f32.mrf.mxu0
    %v2438 = vadd.f32 %v2238, %v2437
    %v2439 = vpop.f32.mrf.mxu0
    %v2440 = vpop.f32.mrf.mxu0
    %2441 = vdwg.mxu0
    %v2442 = vmax.f32 %v2436, 0.0
    %v2443 = vmax.f32 %v2438, 0.0
    %v2444 = vpack.c.bf16 %v2442, %v2442
    %v2445 = vpack.c.bf16 %v2443, %v2443
    %v2446 = vld [vmem:[%s7] sm:$0xf]
    %v2447 = vld [vmem:[%s7 + $0x4] sm:$0xf]
    %v2448 = vld [vmem:[%s7 + $0x8] sm:$0xf]
    %v2449 = vld [vmem:[%s7 + $0xc] sm:$0xf]
    %v2450 = vld [vmem:[%s7 + $0x10] sm:$0xf]
    %v2451 = vld [vmem:[%s7 + $0x14] sm:$0xf]
    %v2452 = vld [vmem:[%s7 + $0x18] sm:$0xf]
    %v2453 = vld [vmem:[%s7 + $0x1c] sm:$0xf]
    %v2454 = vld [vmem:[%s7 + $0x20] sm:$0xf]
    %v2455 = vld [vmem:[%s7 + $0x24] sm:$0xf]
    %v2456 = vld [vmem:[%s7 + $0x28] sm:$0xf]
    %v2457 = vld [vmem:[%s7 + $0x2c] sm:$0xf]
    %v2458 = vld [vmem:[%s7 + $0x30] sm:$0xf]
    %v2459 = vld [vmem:[%s7 + $0x34] sm:$0xf]
    %v2460 = vld [vmem:[%s7 + $0x38] sm:$0xf]
    %v2461 = vld [vmem:[%s7 + $0x3c] sm:$0xf]
    %v2462 = vld [vmem:[%s7 + $0x40] sm:$0xf]
    %v2463 = vld [vmem:[%s7 + $0x44] sm:$0xf]
    %v2464 = vld [vmem:[%s7 + $0x48] sm:$0xf]
    %v2465 = vld [vmem:[%s7 + $0x4c] sm:$0xf]
    %v2466 = vld [vmem:[%s7 + $0x50] sm:$0xf]
    %v2467 = vld [vmem:[%s7 + $0x54] sm:$0xf]
    %v2468 = vld [vmem:[%s7 + $0x58] sm:$0xf]
    %v2469 = vld [vmem:[%s7 + $0x5c] sm:$0xf]
    %v2470 = vld [vmem:[%s7 + $0x60] sm:$0xf]
    %v2471 = vld [vmem:[%s7 + $0x64] sm:$0xf]
    %v2472 = vld [vmem:[%s7 + $0x68] sm:$0xf]
    %v2473 = vld [vmem:[%s7 + $0x6c] sm:$0xf]
    %v2474 = vld [vmem:[%s7 + $0x70] sm:$0xf]
    %v2475 = vld [vmem:[%s7 + $0x74] sm:$0xf]
    %v2476 = vld [vmem:[%s7 + $0x78] sm:$0xf]
    %v2477 = vld [vmem:[%s7 + $0x7c] sm:$0xf]
    %v2478 = vld [vmem:[%s8] sm:$0x1]
    %v2480 = vlaneseq
    %v2481 = vshrl.u32 %v2480, 7
    %v2482 = vsub.s32 0, %v2481
    %v2483 = vrot.slane %v2478, %v2482
    %v2517 = vunpack.c.l.b16 %v2446
    %v2518 = vunpack.c.l.b16 %v2447
    %v2519 = vunpack.c.l.b16 %v2448
    %v2520 = vunpack.c.l.b16 %v2449
    %v2521 = vunpack.c.l.b16 %v2450
    %v2522 = vunpack.c.l.b16 %v2451
    %v2523 = vunpack.c.l.b16 %v2452
    %v2524 = vunpack.c.l.b16 %v2453
    %v2525 = vunpack.c.l.b16 %v2454
    %v2526 = vunpack.c.l.b16 %v2455
    %v2527 = vunpack.c.l.b16 %v2456
    %v2528 = vunpack.c.l.b16 %v2457
    %v2529 = vunpack.c.l.b16 %v2458
    %v2530 = vunpack.c.l.b16 %v2459
    %v2531 = vunpack.c.l.b16 %v2460
    %v2532 = vunpack.c.l.b16 %v2461
    %v2533 = vunpack.c.l.b16 %v2462
    %v2534 = vunpack.c.l.b16 %v2463
    %v2535 = vunpack.c.l.b16 %v2464
    %v2536 = vunpack.c.l.b16 %v2465
    %v2537 = vunpack.c.l.b16 %v2466
    %v2538 = vunpack.c.l.b16 %v2467
    %v2539 = vunpack.c.l.b16 %v2468
    %v2540 = vunpack.c.l.b16 %v2469
    %v2541 = vunpack.c.l.b16 %v2470
    %v2542 = vunpack.c.l.b16 %v2471
    %v2543 = vunpack.c.l.b16 %v2472
    %v2544 = vunpack.c.l.b16 %v2473
    %v2545 = vunpack.c.l.b16 %v2474
    %v2546 = vunpack.c.l.b16 %v2475
    %v2547 = vunpack.c.l.b16 %v2476
    %v2548 = vunpack.c.l.b16 %v2477
    %v2549 = vpack.c.b16 %v2518, %v2517
    %v2550 = vpack.c.b16 %v2520, %v2519
    %v2551 = vpack.c.b16 %v2522, %v2521
    %v2552 = vpack.c.b16 %v2524, %v2523
    %v2553 = vpack.c.b16 %v2526, %v2525
    %v2554 = vpack.c.b16 %v2528, %v2527
    %v2555 = vpack.c.b16 %v2530, %v2529
    %v2556 = vpack.c.b16 %v2532, %v2531
    %v2557 = vpack.c.b16 %v2534, %v2533
    %v2558 = vpack.c.b16 %v2536, %v2535
    %v2559 = vpack.c.b16 %v2538, %v2537
    %v2560 = vpack.c.b16 %v2540, %v2539
    %v2561 = vpack.c.b16 %v2542, %v2541
    %v2562 = vpack.c.b16 %v2544, %v2543
    %v2563 = vpack.c.b16 %v2546, %v2545
    %v2564 = vpack.c.b16 %v2548, %v2547
    %2581 = vmatprep.subr.bf16.mxu0 0
    %2582 = vmatpush1.bf16.msra.mxu0 %v2556
    %2583 = vmatprep.subr.bf16.mxu0 0
    %2584 = vmatpush1.bf16.msra.mxu0 %v2555
    %2585 = vmatprep.subr.bf16.mxu0 0
    %2586 = vmatpush1.bf16.msra.mxu0 %v2554
    %2587 = vmatprep.subr.bf16.mxu0 0
    %2588 = vmatpush1.bf16.msra.mxu0 %v2553
    %2589 = vmatprep.subr.bf16.mxu0 0
    %2590 = vmatpush1.bf16.msra.mxu0 %v2552
    %2591 = vmatprep.subr.bf16.mxu0 0
    %2592 = vmatpush1.bf16.msra.mxu0 %v2551
    %2593 = vmatprep.subr.bf16.mxu0 0
    %2594 = vmatpush1.bf16.msra.mxu0 %v2550
    %2595 = vmatprep.subr.bf16.mxu0 0
    %2596 = vmatpush1.bf16.msra.mxu0 %v2549
    %2597 = vmatprep.subr.bf16.mxu0 0
    %2598 = vmatpush2.bf16.msra.mxu0 %v2564
    %2599 = vmatprep.subr.bf16.mxu0 0
    %2600 = vmatpush2.bf16.msra.mxu0 %v2563
    %2601 = vmatprep.subr.bf16.mxu0 0
    %2602 = vmatpush2.bf16.msra.mxu0 %v2562
    %2603 = vmatprep.subr.bf16.mxu0 0
    %2604 = vmatpush2.bf16.msra.mxu0 %v2561
    %2605 = vmatprep.subr.bf16.mxu0 0
    %2606 = vmatpush2.bf16.msra.mxu0 %v2560
    %2607 = vmatprep.subr.bf16.mxu0 0
    %2608 = vmatpush2.bf16.msra.mxu0 %v2559
    %2609 = vmatprep.subr.bf16.mxu0 0
    %2610 = vmatpush2.bf16.msra.mxu0 %v2558
    %2611 = vmatprep.subr.bf16.mxu0 0
    %2612 = vmatpush2.bf16.msra.mxu0 %v2557
    %2613 = vmatprep.mubr.bf16.mxu0 %v2445
    %2614 = vmatmul.mubr.bf16.gmra.mxu0 %v2444
    %v2615 = vpop.f32.mrf.mxu0
    %v2616 = vadd.f32 %v2483, %v2615
    %v2617 = vpop.f32.mrf.mxu0
    %v2618 = vpop.f32.mrf.mxu0
    %v2619 = vpop.f32.mrf.mxu0
    %2620 = vdwg.mxu0
    %v2621 = vxor.u32 %v2616, 2147483648
    %v2622 = vmul.f32 %v2621, 1.442695
    %v2623 = vpow.pop %v2622
    %v2624 = vadd.f32 %v2623, 1.0
    %v2625 = vrcp.pop %v2624
    %v2626 = vmul.f32 1.0, %v2625
    %v2627 = vsub.f32 1.0, %v2626
    %2629 = vrot.lane.b32.xlu0 %v2627, 127
    %v2630 = vpop.permute.xlu0 %2629
    %v2632 = vmul.f32 %v2627, %v2630
    %2634 = vrot.lane.b32.xlu0 %v2632, 1
    %v2635 = vpop.permute.xlu0 %2634
    %vm2637 = vcmask 7168
    %v2638 = vsel %vm2637, %v2627, %v2635
    %2640 = vrot.lane.b32.xlu0 %v2626, 2
    %v2641 = vpop.permute.xlu0 %2640
    %2644 = vrot.lane.b32.xlu0 %v2638, 4
    %v2645 = vpop.permute.xlu0 %2644
    %vm2647 = vcmask 15360
    %v2648 = vsel %vm2647, %v2616, %v2641
    %vm2649 = vcmask 31744
    %v2650 = vsel %vm2649, %v2648, %v2645
    %vm2651 = vcmask 48128
    %2652 = vst.msk [vmem:[%s9] sm:$0xff] %vm2651, %v2650
    // Predicated region
    $region54: #{avgpool_mlp_batched.1} parent=1 // pred_check
      _
    $region55: #{avgpool_mlp_batched.1} parent=1 // pred_check_branch
      %2654 = sbr.rel (0) target = $region57
    $region56: #{avgpool_mlp_batched.1} parent=1 // pred_region
      _
    $region57: #{avgpool_mlp_batched.1} parent=1 // pred_fallthru
      _
    // Predicated region
    $region58: #{avgpool_mlp_batched.1} parent=1 // pred_check
      _
    $region59: #{avgpool_mlp_batched.1} parent=1 // pred_check_branch
      %2656 = sbr.rel (0) target = $region61
    $region60: #{avgpool_mlp_batched.1} parent=1 // pred_region
      _
    $region61: #{avgpool_mlp_batched.1} parent=1 // pred_fallthru
      _
    %2657 = vsyncpa [#allocation3], 1
    %2658 = vsyncpa [#allocation5], 1
    %2659 = vsyncpa [#allocation8], 1

</llo_original>
